<compile_context>
chip_gen: v7x
topology: tpu7x:2x2x1
jax: 0.10.0
libtpu: 0.0.40
codegen_flags: <defaults>
</compile_context>

<pallas_src>
import numpy as np
import jax
import jax.numpy as jnp
from jax import lax
from jax.experimental import pallas as pl
from jax.experimental.pallas import tpu as pltpu

# ---------------- model config: EEGNet(conv1_size=16, n_Hb=1) ----------------
CONV1_SIZE = 16          # temporal kernel of conv1 (module arg; default 64)
N_HB = 1
F1 = 8 * N_HB            # 8
D = 2
DF1 = D * F1             # 16
F2 = 16
K3 = 16                  # Conv3 depthwise temporal kernel
P1 = CONV1_SIZE // 2     # conv1 padding
P3 = 8                   # Conv3 padding
H_EEG = 20               # conv2 kernel height == required input height
T = 124                  # input time length (flatten is exactly 16*4 = 64)
B = 2

TPAD = T + 2 * P1                      # padded time per sample             (140)
TPADP = ((TPAD + 127) // 128) * 128    # lane-aligned per-sample stride     (256)
W1 = TPAD - CONV1_SIZE + 1             # width after conv1                  (125)
WP4 = W1 // 4                          # width after AvgPool2d((1,4))        (31)
W3 = WP4 + 2 * P3 - K3 + 1             # width after Conv3 depthwise         (32)
WP8 = W3 // 8                          # width after AvgPool2d((1,8))         (4)
assert F2 * WP8 == 64, "classifier expects 16*4 = 64 features"

DEFAULT = lax.Precision.DEFAULT
HIGHEST = lax.Precision.HIGHEST


# --------------------------------- kernel ------------------------------------
def eegnet_kernel(x_ref, w2_ref, tap_ref, pbl_ref, wpf_ref, wlt_ref, srow_ref,
                  o_ref):
    bb = o_ref.shape[0]          # samples in this block (static)
    rc1 = bb * DF1               # stacked rows after conv2      (samples x chans)
    rc2 = bb * F2                # stacked rows after pointwise  (samples x chans)

    # (1) conv2 spatial (electrode) contraction for ALL bb samples as one MXU
    #     matmul; the block-diagonal weights yield the sample-stacked
    #     (bb*DF1, TPADP) layout directly, so nothing downstream needs transposes.
    u = jnp.dot(w2_ref[...], x_ref[...], precision=DEFAULT,
                preferred_element_type=jnp.float32)                # (rc1, TPADP)

    tap = tap_ref[...]
    w1s = tap[0:rc1, 0:CONV1_SIZE]                                 # conv1 taps
    w3 = tap[0:rc1, CONV1_SIZE:CONV1_SIZE + K3]                    # Conv3 dw taps
    b1 = tap[0:rc1, CONV1_SIZE + K3:CONV1_SIZE + K3 + 1]           # BN1+BN2 bias
    b3 = tap[0:rc2, CONV1_SIZE + K3 + 1:CONV1_SIZE + K3 + 2]       # BN3 bias

    # (2) conv1 temporal taps (BN1*BN2 scale folded), batched over the whole
    #     block.  Static shifted slices lower to lane rotates; the 256-lane
    #     per-row stride keeps every tap window inside its own row.  Only the
    #     first 128 lanes are kept (valid width W1 = 125).
    # TODO(synk): these shifted slices could also be pltpu.roll; the slice form
    # is kept because it is the exact (validated) arithmetic of the reference.
    z = w1s[:, 0:1] * u[:, 0:128]
    for k in range(1, CONV1_SIZE):
        z = z + w1s[:, k:k + 1] * u[:, k:k + 128]
    z = z + b1
    z = jnp.where(z > 0, z, jnp.exp(z) - 1.0)      # ELU; Dropout = id at inference

    # (3) AvgPool2d((1,4)) + Conv3 zero padding as one constant matmul
    #     (rows >= 124 of the pool matrix are zero, killing the tap tail).
    p2 = jnp.dot(z, pbl_ref[0:128, :], precision=DEFAULT,
                 preferred_element_type=jnp.float32)               # (rc1, 128)

    # (4) Conv3 depthwise temporal taps, batched over the whole block.
    y3 = w3[:, 0:1] * p2[:, 0:W3]
    for k in range(1, K3):
        y3 = y3 + w3[:, k:k + 1] * p2[:, k:k + W3]                 # (rc1, W3)

    # (5) pointwise 1x1 (BN3 scale folded) as one block-diagonal matmul.
    z3 = jnp.dot(wpf_ref[...], y3, precision=DEFAULT,
                 preferred_element_type=jnp.float32) + b3          # (rc2, W3)
    z3 = jnp.where(z3 > 0, z3, jnp.exp(z3) - 1.0)  # ELU; Dropout = id at inference

    # (6) AvgPool2d((1,8)) + flatten + Linear(64,3): the pool is folded into the
    #     per-class weight tiles; one lane-reduction per class plus one small
    #     matmul (within-sample channel sum) produces every logit in the block.
    wcls = wlt_ref[...]                                            # (3*rc2, W3)
    s0 = jnp.sum(z3 * wcls[0:rc2, :], axis=1, keepdims=True)       # (rc2, 1)
    s1 = jnp.sum(z3 * wcls[rc2:2 * rc2, :], axis=1, keepdims=True)
    s2 = jnp.sum(z3 * wcls[2 * rc2:3 * rc2, :], axis=1, keepdims=True)
    col = lax.broadcasted_iota(jnp.int32, (1, 128), 1)
    rs = (s0 * (col == 0).astype(jnp.float32)
          + s1 * (col == 1).astype(jnp.float32)
          + s2 * (col == 2).astype(jnp.float32))                   # (rc2, 128)
    logits = jnp.dot(srow_ref[...], rs, precision=HIGHEST,
                     preferred_element_type=jnp.float32)           # (bb, 128)
    # lane-dense unmasked store; columns >= 3 are zero and sliced off outside.
    o_ref[...] = logits + pbl_ref[128:129, :]


# -------------------------------- wrapper -------------------------------------
def eegnet_forward(x, params):
    (w_conv1, w_conv2, w_conv3, w_point, Wl, bl, bn1, bn2, bn3) = params
    eps = 1e-5

    def affine(gamma, beta, mean, var):
        a = gamma / jnp.sqrt(var + eps)
        return a, beta - mean * a

    a1, b1 = affine(*bn1)
    a2, b2 = affine(*bn2)
    a3, b3 = affine(*bn3)

    w1 = w_conv1[:, 0, 0, :]                  # (F1, K1)
    w2 = w_conv2[:, 0, :, 0]                  # (DF1, 20)
    w3 = w_conv3[:, 0, 0, :]                  # (DF1, K3)
    wp = w_point[:, :, 0, 0]                  # (F2, DF1)

    # Fold BN1 and BN2 into the temporal taps + a single per-channel bias.
    a1d = jnp.repeat(a1, D)
    w1s = (a2 * a1d)[:, None] * jnp.repeat(w1, D, axis=0)              # (DF1, K1)
    bias1 = a2 * (jnp.repeat(b1, D) * jnp.sum(w2, axis=1)) + b2        # (DF1,)
    # Fold BN3 scale into the pointwise weights (bias stays).
    wpf = a3[:, None] * wp                                             # (F2, DF1)
    # Fold AvgPool2d((1,8)) into the classifier weights (PyTorch view(-1,64) is
    # channel-major, so reshape to (3, F2, WP8) first).
    wl_eff = 0.125 * jnp.repeat(Wl.reshape(3, F2, WP8), 8, axis=2)     # (3, F2, W3)

    # ---- batch blocking -------------------------------------------------------
    nb = x.shape[0]
    # BB*DF1 rows per matmul (MXU fill) vs. >= 2 "parallel" grid steps for big
    # batches (both v7x TensorCores).  When the grid has > 1 step BB is a
    # multiple of 8 so every block dimension stays tiling-friendly.
    if nb <= 16:
        BB = nb
    elif nb <= 64:
        BB = ((nb + 15) // 16) * 8
    else:
        BB = 32
    nbp = ((nb + BB - 1) // BB) * BB
    nsteps = nbp // BB
    rc1, rc2 = BB * DF1, BB * F2
    TR = max(rc1, rc2)

    # ---- per-step streamed input: (samples*electrodes, padded time), bf16 ----
    x_sq = x[:, 0]                                                     # (nb,20,T)
    if nbp != nb:
        x_sq = jnp.pad(x_sq, ((0, nbp - nb), (0, 0), (0, 0)))
    x_pad = jnp.pad(x_sq, ((0, 0), (0, 0), (P1, TPADP - T - P1)))      # (nbp,20,256)
    x_st = x_pad.reshape(nbp * H_EEG, TPADP).astype(jnp.bfloat16)

    # ---- resident constants (constant index_map -> fetched once) -------------
    eyeb = jnp.eye(BB, dtype=jnp.float32)
    w2big = jnp.kron(eyeb, w2).astype(jnp.bfloat16)                    # (rc1, BB*20)
    wpf_blk = jnp.kron(eyeb, wpf)                                      # (rc2, rc1)
    srow = jnp.kron(eyeb, jnp.ones((1, F2), jnp.float32))              # (BB, rc2)

    ncol = CONV1_SIZE + K3 + 2
    tap = jnp.zeros((TR, ncol), jnp.float32)
    tap = tap.at[:rc1, 0:CONV1_SIZE].set(jnp.tile(w1s, (BB, 1)))
    tap = tap.at[:rc1, CONV1_SIZE:CONV1_SIZE + K3].set(jnp.tile(w3, (BB, 1)))
    tap = tap.at[:rc1, CONV1_SIZE + K3].set(jnp.tile(bias1, BB))
    tap = tap.at[:rc2, CONV1_SIZE + K3 + 1].set(jnp.tile(b3, BB))

    # AvgPool(1,4) + Conv3 zero padding as a (128,128) matrix; one extra row
    # carries the classifier bias (lane-padded to 128).
    p4 = np.zeros((136, 128), np.float32)
    for i in range(WP4 * 4):
        p4[i, i // 4 + P3] = 0.25
    pbl = jnp.asarray(p4).at[128, 0:3].set(bl)

    # Per-class classifier weight tiles (AvgPool(1,8) folded), stacked on rows.
    wlt = jnp.zeros((3 * rc2, W3), jnp.float32)
    for o in range(3):
        wlt = wlt.at[o * rc2:(o + 1) * rc2, :].set(jnp.tile(wl_eff[o], (BB, 1)))

    def cspec(shape):
        return pl.BlockSpec(shape, lambda b: (0,) * len(shape))

    out = pl.pallas_call(
        eegnet_kernel,
        out_shape=jax.ShapeDtypeStruct((nbp, 128), jnp.float32),
        grid=(nsteps,),
        in_specs=[
            pl.BlockSpec((BB * H_EEG, TPADP), lambda b: (b, 0)),  # x block (bf16)
            cspec((rc1, BB * H_EEG)),     # block-diag conv2 spatial weights
            cspec((TR, ncol)),            # packed taps + biases
            cspec((136, 128)),            # pool(1,4)+pad matrix + classifier bias
            cspec((rc2, rc1)),            # block-diag pointwise 1x1 (BN3 folded)
            cspec((3 * rc2, W3)),         # per-class classifier tiles (pool(1,8) folded)
            cspec((BB, rc2)),             # within-sample channel-sum matrix
        ],
        out_specs=pl.BlockSpec((BB, 128), lambda b: (b, 0)),
        compiler_params=pltpu.CompilerParams(dimension_semantics=("parallel",)),
    )(x_st, w2big, tap, pbl, wpf_blk, wlt, srow)
    return out[:nb, :3]


# --------------------- pure-JAX reference (PyTorch semantics) -----------------
def _elu(x):
    return jnp.where(x > 0, x, jnp.exp(x) - 1.0)


def _bn_eval(x, gamma, beta, mean, var, eps=1e-5):
    a = gamma / jnp.sqrt(var + eps)
    return x * a[None, :, None, None] + (beta - mean * a)[None, :, None, None]


def reference_forward(x, params):
    (w_conv1, w_conv2, w_conv3, w_point, Wl, bl, bn1, bn2, bn3) = params
    dn = ('NCHW', 'OIHW', 'NCHW')
    y = lax.conv_general_dilated(x, w_conv1, (1, 1), ((0, 0), (P1, P1)),
                                 dimension_numbers=dn, precision=HIGHEST)
    y = _bn_eval(y, *bn1)
    y = lax.conv_general_dilated(y, w_conv2, (1, 1), ((0, 0), (0, 0)),
                                 dimension_numbers=dn, feature_group_count=F1,
                                 precision=HIGHEST)
    y = _elu(_bn_eval(y, *bn2))
    y = y[..., :WP4 * 4].reshape(y.shape[0], DF1, 1, WP4, 4).mean(-1)
    y = lax.conv_general_dilated(y, w_conv3, (1, 1), ((0, 0), (P3, P3)),
                                 dimension_numbers=dn, feature_group_count=DF1,
                                 precision=HIGHEST)
    y = lax.conv_general_dilated(y, w_point, (1, 1), ((0, 0), (0, 0)),
                                 dimension_numbers=dn, precision=HIGHEST)
    y = _elu(_bn_eval(y, *bn3))
    y = y[..., :WP8 * 8].reshape(y.shape[0], F2, 1, WP8, 8).mean(-1)
    y = y.reshape(y.shape[0], -1)
    return jnp.dot(y, Wl.T, precision=HIGHEST) + bl


# ----------------------------------- main --------------------------------------
if __name__ == "__main__":
    key = jax.random.PRNGKey(0)
    ks = jax.random.split(key, 10)

    def nrm(k, shape, s=0.1):
        return s * jax.random.normal(k, shape, jnp.float32)

    def bn_init(k, c):
        k1, k2, k3, k4 = jax.random.split(k, 4)
        gamma = 1.0 + 0.1 * jax.random.normal(k1, (c,), jnp.float32)
        beta = 0.1 * jax.random.normal(k2, (c,), jnp.float32)
        mean = 0.1 * jax.random.normal(k3, (c,), jnp.float32)
        var = jax.random.uniform(k4, (c,), jnp.float32, 0.5, 1.5)
        return gamma, beta, mean, var

    params = (
        nrm(ks[0], (F1, 1, 1, CONV1_SIZE)),      # conv1 weight
        nrm(ks[1], (DF1, 1, H_EEG, 1)),          # conv2 (grouped) weight
        nrm(ks[2], (DF1, 1, 1, K3)),             # Conv3 depthwise weight
        nrm(ks[3], (F2, DF1, 1, 1)),             # Conv3 pointwise weight
        nrm(ks[4], (3, F2 * WP8)),               # classifier weight
        nrm(ks[5], (3,)),                        # classifier bias
        bn_init(ks[6], F1),                      # BN1 (gamma, beta, mean, var)
        bn_init(ks[7], DF1),                     # BN2
        bn_init(ks[8], F2),                      # BN3
    )
    x = jax.random.normal(ks[9], (B, N_HB, H_EEG, T), jnp.float32)

    out = jax.block_until_ready(eegnet_forward(x, params))
    ref = jax.block_until_ready(reference_forward(x, params))
    assert out.shape == (B, 3)
    err = float(jnp.max(jnp.abs(out - ref)))
    assert err < 2e-3, f"max abs error vs reference: {err}"
    print("KERNEL_OK")
</pallas_src>

<mosaic_0001>
module attributes {stable_mosaic.version = 11 : i64} {
  func.func @eegnet_kernel(%arg0: i32, %arg1: memref<40x256xbf16, #tpu.memory_space<vmem>>, %arg2: memref<32x40xbf16, #tpu.memory_space<vmem>>, %arg3: memref<32x34xf32, #tpu.memory_space<vmem>>, %arg4: memref<136x128xf32, #tpu.memory_space<vmem>>, %arg5: memref<32x32xf32, #tpu.memory_space<vmem>>, %arg6: memref<96x32xf32, #tpu.memory_space<vmem>>, %arg7: memref<2x32xf32, #tpu.memory_space<vmem>>, %arg8: memref<2x128xf32, #tpu.memory_space<vmem>>) attributes {dimension_semantics = [#tpu.dimension_semantics<parallel>], iteration_bounds = array<i64: 1>, scalar_prefetch = 0 : i64, scratch_operands = 0 : i64, tpu.core_type = #tpu.core_type<tc>, window_params = [{transform_indices = @transform_0, window_bounds = array<i64: 40, 256>}, {pipeline_mode = #tpu.pipeline_mode<synchronous>, transform_indices = @transform_1, window_bounds = array<i64: 32, 40>}, {pipeline_mode = #tpu.pipeline_mode<synchronous>, transform_indices = @transform_2, window_bounds = array<i64: 32, 34>}, {pipeline_mode = #tpu.pipeline_mode<synchronous>, transform_indices = @transform_3, window_bounds = array<i64: 136, 128>}, {pipeline_mode = #tpu.pipeline_mode<synchronous>, transform_indices = @transform_4, window_bounds = array<i64: 32, 32>}, {pipeline_mode = #tpu.pipeline_mode<synchronous>, transform_indices = @transform_5, window_bounds = array<i64: 96, 32>}, {pipeline_mode = #tpu.pipeline_mode<synchronous>, transform_indices = @transform_6, window_bounds = array<i64: 2, 32>}, {transform_indices = @transform_7, window_bounds = array<i64: 2, 128>}]} {
    %c0 = arith.constant 0 : index
    %c0_0 = arith.constant 0 : index
    %0 = vector.load %arg2[%c0, %c0_0] : memref<32x40xbf16, #tpu.memory_space<vmem>>, vector<32x40xbf16>
    %c0_1 = arith.constant 0 : index
    %c0_2 = arith.constant 0 : index
    %1 = vector.load %arg1[%c0_1, %c0_2] : memref<40x256xbf16, #tpu.memory_space<vmem>>, vector<40x256xbf16>
    %cst = arith.constant dense<0.000000e+00> : vector<32x256xf32>
    %2 = tpu.matmul %0, %1, %cst {dimension_numbers = #tpu.dot_dimension_numbers<[1], [0], [0], [1], [0, 0, 1, 1], [], []>} : vector<32x40xbf16>, vector<40x256xbf16>, vector<32x256xf32> -> vector<32x256xf32>
    %c0_3 = arith.constant 0 : index
    %c0_4 = arith.constant 0 : index
    %3 = vector.load %arg3[%c0_3, %c0_4] : memref<32x34xf32, #tpu.memory_space<vmem>>, vector<32x34xf32>
    %4 = vector.extract_strided_slice %3 {offsets = [0, 0], sizes = [32, 16], strides = [1, 1]} : vector<32x34xf32> to vector<32x16xf32>
    %5 = vector.extract_strided_slice %3 {offsets = [0, 16], sizes = [32, 16], strides = [1, 1]} : vector<32x34xf32> to vector<32x16xf32>
    %6 = vector.extract_strided_slice %3 {offsets = [0, 32], sizes = [32, 1], strides = [1, 1]} : vector<32x34xf32> to vector<32x1xf32>
    %7 = vector.extract_strided_slice %3 {offsets = [0, 33], sizes = [32, 1], strides = [1, 1]} : vector<32x34xf32> to vector<32x1xf32>
    %8 = vector.extract_strided_slice %4 {offsets = [0, 0], sizes = [32, 1], strides = [1, 1]} : vector<32x16xf32> to vector<32x1xf32>
    %9 = vector.extract_strided_slice %2 {offsets = [0, 0], sizes = [32, 128], strides = [1, 1]} : vector<32x256xf32> to vector<32x128xf32>
    %10 = vector.broadcast %8 : vector<32x1xf32> to vector<32x128xf32>
    %11 = arith.mulf %10, %9 : vector<32x128xf32>
    %12 = vector.extract_strided_slice %4 {offsets = [0, 1], sizes = [32, 1], strides = [1, 1]} : vector<32x16xf32> to vector<32x1xf32>
    %13 = vector.extract_strided_slice %2 {offsets = [0, 1], sizes = [32, 128], strides = [1, 1]} : vector<32x256xf32> to vector<32x128xf32>
    %14 = vector.broadcast %12 : vector<32x1xf32> to vector<32x128xf32>
    %15 = arith.mulf %14, %13 : vector<32x128xf32>
    %16 = arith.addf %11, %15 : vector<32x128xf32>
    %17 = vector.extract_strided_slice %4 {offsets = [0, 2], sizes = [32, 1], strides = [1, 1]} : vector<32x16xf32> to vector<32x1xf32>
    %18 = vector.extract_strided_slice %2 {offsets = [0, 2], sizes = [32, 128], strides = [1, 1]} : vector<32x256xf32> to vector<32x128xf32>
    %19 = vector.broadcast %17 : vector<32x1xf32> to vector<32x128xf32>
    %20 = arith.mulf %19, %18 : vector<32x128xf32>
    %21 = arith.addf %16, %20 : vector<32x128xf32>
    %22 = vector.extract_strided_slice %4 {offsets = [0, 3], sizes = [32, 1], strides = [1, 1]} : vector<32x16xf32> to vector<32x1xf32>
    %23 = vector.extract_strided_slice %2 {offsets = [0, 3], sizes = [32, 128], strides = [1, 1]} : vector<32x256xf32> to vector<32x128xf32>
    %24 = vector.broadcast %22 : vector<32x1xf32> to vector<32x128xf32>
    %25 = arith.mulf %24, %23 : vector<32x128xf32>
    %26 = arith.addf %21, %25 : vector<32x128xf32>
    %27 = vector.extract_strided_slice %4 {offsets = [0, 4], sizes = [32, 1], strides = [1, 1]} : vector<32x16xf32> to vector<32x1xf32>
    %28 = vector.extract_strided_slice %2 {offsets = [0, 4], sizes = [32, 128], strides = [1, 1]} : vector<32x256xf32> to vector<32x128xf32>
    %29 = vector.broadcast %27 : vector<32x1xf32> to vector<32x128xf32>
    %30 = arith.mulf %29, %28 : vector<32x128xf32>
    %31 = arith.addf %26, %30 : vector<32x128xf32>
    %32 = vector.extract_strided_slice %4 {offsets = [0, 5], sizes = [32, 1], strides = [1, 1]} : vector<32x16xf32> to vector<32x1xf32>
    %33 = vector.extract_strided_slice %2 {offsets = [0, 5], sizes = [32, 128], strides = [1, 1]} : vector<32x256xf32> to vector<32x128xf32>
    %34 = vector.broadcast %32 : vector<32x1xf32> to vector<32x128xf32>
    %35 = arith.mulf %34, %33 : vector<32x128xf32>
    %36 = arith.addf %31, %35 : vector<32x128xf32>
    %37 = vector.extract_strided_slice %4 {offsets = [0, 6], sizes = [32, 1], strides = [1, 1]} : vector<32x16xf32> to vector<32x1xf32>
    %38 = vector.extract_strided_slice %2 {offsets = [0, 6], sizes = [32, 128], strides = [1, 1]} : vector<32x256xf32> to vector<32x128xf32>
    %39 = vector.broadcast %37 : vector<32x1xf32> to vector<32x128xf32>
    %40 = arith.mulf %39, %38 : vector<32x128xf32>
    %41 = arith.addf %36, %40 : vector<32x128xf32>
    %42 = vector.extract_strided_slice %4 {offsets = [0, 7], sizes = [32, 1], strides = [1, 1]} : vector<32x16xf32> to vector<32x1xf32>
    %43 = vector.extract_strided_slice %2 {offsets = [0, 7], sizes = [32, 128], strides = [1, 1]} : vector<32x256xf32> to vector<32x128xf32>
    %44 = vector.broadcast %42 : vector<32x1xf32> to vector<32x128xf32>
    %45 = arith.mulf %44, %43 : vector<32x128xf32>
    %46 = arith.addf %41, %45 : vector<32x128xf32>
    %47 = vector.extract_strided_slice %4 {offsets = [0, 8], sizes = [32, 1], strides = [1, 1]} : vector<32x16xf32> to vector<32x1xf32>
    %48 = vector.extract_strided_slice %2 {offsets = [0, 8], sizes = [32, 128], strides = [1, 1]} : vector<32x256xf32> to vector<32x128xf32>
    %49 = vector.broadcast %47 : vector<32x1xf32> to vector<32x128xf32>
    %50 = arith.mulf %49, %48 : vector<32x128xf32>
    %51 = arith.addf %46, %50 : vector<32x128xf32>
    %52 = vector.extract_strided_slice %4 {offsets = [0, 9], sizes = [32, 1], strides = [1, 1]} : vector<32x16xf32> to vector<32x1xf32>
    %53 = vector.extract_strided_slice %2 {offsets = [0, 9], sizes = [32, 128], strides = [1, 1]} : vector<32x256xf32> to vector<32x128xf32>
    %54 = vector.broadcast %52 : vector<32x1xf32> to vector<32x128xf32>
    %55 = arith.mulf %54, %53 : vector<32x128xf32>
    %56 = arith.addf %51, %55 : vector<32x128xf32>
    %57 = vector.extract_strided_slice %4 {offsets = [0, 10], sizes = [32, 1], strides = [1, 1]} : vector<32x16xf32> to vector<32x1xf32>
    %58 = vector.extract_strided_slice %2 {offsets = [0, 10], sizes = [32, 128], strides = [1, 1]} : vector<32x256xf32> to vector<32x128xf32>
    %59 = vector.broadcast %57 : vector<32x1xf32> to vector<32x128xf32>
    %60 = arith.mulf %59, %58 : vector<32x128xf32>
    %61 = arith.addf %56, %60 : vector<32x128xf32>
    %62 = vector.extract_strided_slice %4 {offsets = [0, 11], sizes = [32, 1], strides = [1, 1]} : vector<32x16xf32> to vector<32x1xf32>
    %63 = vector.extract_strided_slice %2 {offsets = [0, 11], sizes = [32, 128], strides = [1, 1]} : vector<32x256xf32> to vector<32x128xf32>
    %64 = vector.broadcast %62 : vector<32x1xf32> to vector<32x128xf32>
    %65 = arith.mulf %64, %63 : vector<32x128xf32>
    %66 = arith.addf %61, %65 : vector<32x128xf32>
    %67 = vector.extract_strided_slice %4 {offsets = [0, 12], sizes = [32, 1], strides = [1, 1]} : vector<32x16xf32> to vector<32x1xf32>
    %68 = vector.extract_strided_slice %2 {offsets = [0, 12], sizes = [32, 128], strides = [1, 1]} : vector<32x256xf32> to vector<32x128xf32>
    %69 = vector.broadcast %67 : vector<32x1xf32> to vector<32x128xf32>
    %70 = arith.mulf %69, %68 : vector<32x128xf32>
    %71 = arith.addf %66, %70 : vector<32x128xf32>
    %72 = vector.extract_strided_slice %4 {offsets = [0, 13], sizes = [32, 1], strides = [1, 1]} : vector<32x16xf32> to vector<32x1xf32>
    %73 = vector.extract_strided_slice %2 {offsets = [0, 13], sizes = [32, 128], strides = [1, 1]} : vector<32x256xf32> to vector<32x128xf32>
    %74 = vector.broadcast %72 : vector<32x1xf32> to vector<32x128xf32>
    %75 = arith.mulf %74, %73 : vector<32x128xf32>
    %76 = arith.addf %71, %75 : vector<32x128xf32>
    %77 = vector.extract_strided_slice %4 {offsets = [0, 14], sizes = [32, 1], strides = [1, 1]} : vector<32x16xf32> to vector<32x1xf32>
    %78 = vector.extract_strided_slice %2 {offsets = [0, 14], sizes = [32, 128], strides = [1, 1]} : vector<32x256xf32> to vector<32x128xf32>
    %79 = vector.broadcast %77 : vector<32x1xf32> to vector<32x128xf32>
    %80 = arith.mulf %79, %78 : vector<32x128xf32>
    %81 = arith.addf %76, %80 : vector<32x128xf32>
    %82 = vector.extract_strided_slice %4 {offsets = [0, 15], sizes = [32, 1], strides = [1, 1]} : vector<32x16xf32> to vector<32x1xf32>
    %83 = vector.extract_strided_slice %2 {offsets = [0, 15], sizes = [32, 128], strides = [1, 1]} : vector<32x256xf32> to vector<32x128xf32>
    %84 = vector.broadcast %82 : vector<32x1xf32> to vector<32x128xf32>
    %85 = arith.mulf %84, %83 : vector<32x128xf32>
    %86 = arith.addf %81, %85 : vector<32x128xf32>
    %87 = vector.broadcast %6 : vector<32x1xf32> to vector<32x128xf32>
    %88 = arith.addf %86, %87 : vector<32x128xf32>
    %cst_5 = arith.constant 0.000000e+00 : f32
    %89 = vector.broadcast %cst_5 : f32 to vector<32x128xf32>
    %90 = arith.cmpf ogt, %88, %89 : vector<32x128xf32>
    %91 = math.exp %88 : vector<32x128xf32>
    %cst_6 = arith.constant 1.000000e+00 : f32
    %92 = vector.broadcast %cst_6 : f32 to vector<32x128xf32>
    %93 = arith.subf %91, %92 : vector<32x128xf32>
    %94 = arith.select %90, %88, %93 : vector<32x128xi1>, vector<32x128xf32>
    %c0_7 = arith.constant 0 : index
    %c0_8 = arith.constant 0 : index
    %95 = vector.load %arg4[%c0_7, %c0_8] : memref<136x128xf32, #tpu.memory_space<vmem>>, vector<128x128xf32>
    %cst_9 = arith.constant dense<0.000000e+00> : vector<32x128xf32>
    %96 = tpu.matmul %94, %95, %cst_9 {dimension_numbers = #tpu.dot_dimension_numbers<[1], [0], [0], [1], [0, 0, 1, 1], [], []>} : vector<32x128xf32>, vector<128x128xf32>, vector<32x128xf32> -> vector<32x128xf32>
    %97 = vector.extract_strided_slice %5 {offsets = [0, 0], sizes = [32, 1], strides = [1, 1]} : vector<32x16xf32> to vector<32x1xf32>
    %98 = vector.extract_strided_slice %96 {offsets = [0, 0], sizes = [32, 32], strides = [1, 1]} : vector<32x128xf32> to vector<32x32xf32>
    %99 = vector.broadcast %97 : vector<32x1xf32> to vector<32x32xf32>
    %100 = arith.mulf %99, %98 : vector<32x32xf32>
    %101 = vector.extract_strided_slice %5 {offsets = [0, 1], sizes = [32, 1], strides = [1, 1]} : vector<32x16xf32> to vector<32x1xf32>
    %102 = vector.extract_strided_slice %96 {offsets = [0, 1], sizes = [32, 32], strides = [1, 1]} : vector<32x128xf32> to vector<32x32xf32>
    %103 = vector.broadcast %101 : vector<32x1xf32> to vector<32x32xf32>
    %104 = arith.mulf %103, %102 : vector<32x32xf32>
    %105 = arith.addf %100, %104 : vector<32x32xf32>
    %106 = vector.extract_strided_slice %5 {offsets = [0, 2], sizes = [32, 1], strides = [1, 1]} : vector<32x16xf32> to vector<32x1xf32>
    %107 = vector.extract_strided_slice %96 {offsets = [0, 2], sizes = [32, 32], strides = [1, 1]} : vector<32x128xf32> to vector<32x32xf32>
    %108 = vector.broadcast %106 : vector<32x1xf32> to vector<32x32xf32>
    %109 = arith.mulf %108, %107 : vector<32x32xf32>
    %110 = arith.addf %105, %109 : vector<32x32xf32>
    %111 = vector.extract_strided_slice %5 {offsets = [0, 3], sizes = [32, 1], strides = [1, 1]} : vector<32x16xf32> to vector<32x1xf32>
    %112 = vector.extract_strided_slice %96 {offsets = [0, 3], sizes = [32, 32], strides = [1, 1]} : vector<32x128xf32> to vector<32x32xf32>
    %113 = vector.broadcast %111 : vector<32x1xf32> to vector<32x32xf32>
    %114 = arith.mulf %113, %112 : vector<32x32xf32>
    %115 = arith.addf %110, %114 : vector<32x32xf32>
    %116 = vector.extract_strided_slice %5 {offsets = [0, 4], sizes = [32, 1], strides = [1, 1]} : vector<32x16xf32> to vector<32x1xf32>
    %117 = vector.extract_strided_slice %96 {offsets = [0, 4], sizes = [32, 32], strides = [1, 1]} : vector<32x128xf32> to vector<32x32xf32>
    %118 = vector.broadcast %116 : vector<32x1xf32> to vector<32x32xf32>
    %119 = arith.mulf %118, %117 : vector<32x32xf32>
    %120 = arith.addf %115, %119 : vector<32x32xf32>
    %121 = vector.extract_strided_slice %5 {offsets = [0, 5], sizes = [32, 1], strides = [1, 1]} : vector<32x16xf32> to vector<32x1xf32>
    %122 = vector.extract_strided_slice %96 {offsets = [0, 5], sizes = [32, 32], strides = [1, 1]} : vector<32x128xf32> to vector<32x32xf32>
    %123 = vector.broadcast %121 : vector<32x1xf32> to vector<32x32xf32>
    %124 = arith.mulf %123, %122 : vector<32x32xf32>
    %125 = arith.addf %120, %124 : vector<32x32xf32>
    %126 = vector.extract_strided_slice %5 {offsets = [0, 6], sizes = [32, 1], strides = [1, 1]} : vector<32x16xf32> to vector<32x1xf32>
    %127 = vector.extract_strided_slice %96 {offsets = [0, 6], sizes = [32, 32], strides = [1, 1]} : vector<32x128xf32> to vector<32x32xf32>
    %128 = vector.broadcast %126 : vector<32x1xf32> to vector<32x32xf32>
    %129 = arith.mulf %128, %127 : vector<32x32xf32>
    %130 = arith.addf %125, %129 : vector<32x32xf32>
    %131 = vector.extract_strided_slice %5 {offsets = [0, 7], sizes = [32, 1], strides = [1, 1]} : vector<32x16xf32> to vector<32x1xf32>
    %132 = vector.extract_strided_slice %96 {offsets = [0, 7], sizes = [32, 32], strides = [1, 1]} : vector<32x128xf32> to vector<32x32xf32>
    %133 = vector.broadcast %131 : vector<32x1xf32> to vector<32x32xf32>
    %134 = arith.mulf %133, %132 : vector<32x32xf32>
    %135 = arith.addf %130, %134 : vector<32x32xf32>
    %136 = vector.extract_strided_slice %5 {offsets = [0, 8], sizes = [32, 1], strides = [1, 1]} : vector<32x16xf32> to vector<32x1xf32>
    %137 = vector.extract_strided_slice %96 {offsets = [0, 8], sizes = [32, 32], strides = [1, 1]} : vector<32x128xf32> to vector<32x32xf32>
    %138 = vector.broadcast %136 : vector<32x1xf32> to vector<32x32xf32>
    %139 = arith.mulf %138, %137 : vector<32x32xf32>
    %140 = arith.addf %135, %139 : vector<32x32xf32>
    %141 = vector.extract_strided_slice %5 {offsets = [0, 9], sizes = [32, 1], strides = [1, 1]} : vector<32x16xf32> to vector<32x1xf32>
    %142 = vector.extract_strided_slice %96 {offsets = [0, 9], sizes = [32, 32], strides = [1, 1]} : vector<32x128xf32> to vector<32x32xf32>
    %143 = vector.broadcast %141 : vector<32x1xf32> to vector<32x32xf32>
    %144 = arith.mulf %143, %142 : vector<32x32xf32>
    %145 = arith.addf %140, %144 : vector<32x32xf32>
    %146 = vector.extract_strided_slice %5 {offsets = [0, 10], sizes = [32, 1], strides = [1, 1]} : vector<32x16xf32> to vector<32x1xf32>
    %147 = vector.extract_strided_slice %96 {offsets = [0, 10], sizes = [32, 32], strides = [1, 1]} : vector<32x128xf32> to vector<32x32xf32>
    %148 = vector.broadcast %146 : vector<32x1xf32> to vector<32x32xf32>
    %149 = arith.mulf %148, %147 : vector<32x32xf32>
    %150 = arith.addf %145, %149 : vector<32x32xf32>
    %151 = vector.extract_strided_slice %5 {offsets = [0, 11], sizes = [32, 1], strides = [1, 1]} : vector<32x16xf32> to vector<32x1xf32>
    %152 = vector.extract_strided_slice %96 {offsets = [0, 11], sizes = [32, 32], strides = [1, 1]} : vector<32x128xf32> to vector<32x32xf32>
    %153 = vector.broadcast %151 : vector<32x1xf32> to vector<32x32xf32>
    %154 = arith.mulf %153, %152 : vector<32x32xf32>
    %155 = arith.addf %150, %154 : vector<32x32xf32>
    %156 = vector.extract_strided_slice %5 {offsets = [0, 12], sizes = [32, 1], strides = [1, 1]} : vector<32x16xf32> to vector<32x1xf32>
    %157 = vector.extract_strided_slice %96 {offsets = [0, 12], sizes = [32, 32], strides = [1, 1]} : vector<32x128xf32> to vector<32x32xf32>
    %158 = vector.broadcast %156 : vector<32x1xf32> to vector<32x32xf32>
    %159 = arith.mulf %158, %157 : vector<32x32xf32>
    %160 = arith.addf %155, %159 : vector<32x32xf32>
    %161 = vector.extract_strided_slice %5 {offsets = [0, 13], sizes = [32, 1], strides = [1, 1]} : vector<32x16xf32> to vector<32x1xf32>
    %162 = vector.extract_strided_slice %96 {offsets = [0, 13], sizes = [32, 32], strides = [1, 1]} : vector<32x128xf32> to vector<32x32xf32>
    %163 = vector.broadcast %161 : vector<32x1xf32> to vector<32x32xf32>
    %164 = arith.mulf %163, %162 : vector<32x32xf32>
    %165 = arith.addf %160, %164 : vector<32x32xf32>
    %166 = vector.extract_strided_slice %5 {offsets = [0, 14], sizes = [32, 1], strides = [1, 1]} : vector<32x16xf32> to vector<32x1xf32>
    %167 = vector.extract_strided_slice %96 {offsets = [0, 14], sizes = [32, 32], strides = [1, 1]} : vector<32x128xf32> to vector<32x32xf32>
    %168 = vector.broadcast %166 : vector<32x1xf32> to vector<32x32xf32>
    %169 = arith.mulf %168, %167 : vector<32x32xf32>
    %170 = arith.addf %165, %169 : vector<32x32xf32>
    %171 = vector.extract_strided_slice %5 {offsets = [0, 15], sizes = [32, 1], strides = [1, 1]} : vector<32x16xf32> to vector<32x1xf32>
    %172 = vector.extract_strided_slice %96 {offsets = [0, 15], sizes = [32, 32], strides = [1, 1]} : vector<32x128xf32> to vector<32x32xf32>
    %173 = vector.broadcast %171 : vector<32x1xf32> to vector<32x32xf32>
    %174 = arith.mulf %173, %172 : vector<32x32xf32>
    %175 = arith.addf %170, %174 : vector<32x32xf32>
    %c0_10 = arith.constant 0 : index
    %c0_11 = arith.constant 0 : index
    %176 = vector.load %arg5[%c0_10, %c0_11] : memref<32x32xf32, #tpu.memory_space<vmem>>, vector<32x32xf32>
    %cst_12 = arith.constant dense<0.000000e+00> : vector<32x32xf32>
    %177 = tpu.matmul %176, %175, %cst_12 {dimension_numbers = #tpu.dot_dimension_numbers<[1], [0], [0], [1], [0, 0, 1, 1], [], []>} : vector<32x32xf32>, vector<32x32xf32>, vector<32x32xf32> -> vector<32x32xf32>
    %178 = vector.broadcast %7 : vector<32x1xf32> to vector<32x32xf32>
    %179 = arith.addf %177, %178 : vector<32x32xf32>
    %cst_13 = arith.constant 0.000000e+00 : f32
    %180 = vector.broadcast %cst_13 : f32 to vector<32x32xf32>
    %181 = arith.cmpf ogt, %179, %180 : vector<32x32xf32>
    %182 = math.exp %179 : vector<32x32xf32>
    %cst_14 = arith.constant 1.000000e+00 : f32
    %183 = vector.broadcast %cst_14 : f32 to vector<32x32xf32>
    %184 = arith.subf %182, %183 : vector<32x32xf32>
    %185 = arith.select %181, %179, %184 : vector<32x32xi1>, vector<32x32xf32>
    %c0_15 = arith.constant 0 : index
    %c0_16 = arith.constant 0 : index
    %186 = vector.load %arg6[%c0_15, %c0_16] : memref<96x32xf32, #tpu.memory_space<vmem>>, vector<96x32xf32>
    %187 = vector.extract_strided_slice %186 {offsets = [0, 0], sizes = [32, 32], strides = [1, 1]} : vector<96x32xf32> to vector<32x32xf32>
    %188 = arith.mulf %185, %187 : vector<32x32xf32>
    %cst_17 = arith.constant dense<0.000000e+00> : vector<32xf32>
    %189 = vector.multi_reduction <add>, %188, %cst_17 [1] : vector<32x32xf32> to vector<32xf32>
    %190 = vector.shape_cast %189 : vector<32xf32> to vector<32x1xf32>
    %191 = vector.extract_strided_slice %186 {offsets = [32, 0], sizes = [32, 32], strides = [1, 1]} : vector<96x32xf32> to vector<32x32xf32>
    %192 = arith.mulf %185, %191 : vector<32x32xf32>
    %cst_18 = arith.constant dense<0.000000e+00> : vector<32xf32>
    %193 = vector.multi_reduction <add>, %192, %cst_18 [1] : vector<32x32xf32> to vector<32xf32>
    %194 = vector.shape_cast %193 : vector<32xf32> to vector<32x1xf32>
    %195 = vector.extract_strided_slice %186 {offsets = [64, 0], sizes = [32, 32], strides = [1, 1]} : vector<96x32xf32> to vector<32x32xf32>
    %196 = arith.mulf %185, %195 : vector<32x32xf32>
    %cst_19 = arith.constant dense<0.000000e+00> : vector<32xf32>
    %197 = vector.multi_reduction <add>, %196, %cst_19 [1] : vector<32x32xf32> to vector<32xf32>
    %198 = vector.shape_cast %197 : vector<32xf32> to vector<32x1xf32>
    %199 = tpu.iota {dimensions = array<i32: 1>} : vector<1x128xi32>
    %c0_i32 = arith.constant 0 : i32
    %200 = vector.broadcast %c0_i32 : i32 to vector<1x128xi32>
    %201 = arith.cmpi eq, %199, %200 : vector<1x128xi32>
    %202 = arith.extui %201 : vector<1x128xi1> to vector<1x128xi32>
    %203 = arith.sitofp %202 : vector<1x128xi32> to vector<1x128xf32>
    %204 = vector.broadcast %190 : vector<32x1xf32> to vector<32x128xf32>
    %205 = vector.broadcast %203 : vector<1x128xf32> to vector<32x128xf32>
    %206 = arith.mulf %204, %205 : vector<32x128xf32>
    %c1_i32 = arith.constant 1 : i32
    %207 = vector.broadcast %c1_i32 : i32 to vector<1x128xi32>
    %208 = arith.cmpi eq, %199, %207 : vector<1x128xi32>
    %209 = arith.extui %208 : vector<1x128xi1> to vector<1x128xi32>
    %210 = arith.sitofp %209 : vector<1x128xi32> to vector<1x128xf32>
    %211 = vector.broadcast %194 : vector<32x1xf32> to vector<32x128xf32>
    %212 = vector.broadcast %210 : vector<1x128xf32> to vector<32x128xf32>
    %213 = arith.mulf %211, %212 : vector<32x128xf32>
    %214 = arith.addf %206, %213 : vector<32x128xf32>
    %c2_i32 = arith.constant 2 : i32
    %215 = vector.broadcast %c2_i32 : i32 to vector<1x128xi32>
    %216 = arith.cmpi eq, %199, %215 : vector<1x128xi32>
    %217 = arith.extui %216 : vector<1x128xi1> to vector<1x128xi32>
    %218 = arith.sitofp %217 : vector<1x128xi32> to vector<1x128xf32>
    %219 = vector.broadcast %198 : vector<32x1xf32> to vector<32x128xf32>
    %220 = vector.broadcast %218 : vector<1x128xf32> to vector<32x128xf32>
    %221 = arith.mulf %219, %220 : vector<32x128xf32>
    %222 = arith.addf %214, %221 : vector<32x128xf32>
    %c0_20 = arith.constant 0 : index
    %c0_21 = arith.constant 0 : index
    %223 = vector.load %arg7[%c0_20, %c0_21] : memref<2x32xf32, #tpu.memory_space<vmem>>, vector<2x32xf32>
    %cst_22 = arith.constant dense<0.000000e+00> : vector<2x128xf32>
    %224 = tpu.matmul %223, %222, %cst_22 {dimension_numbers = #tpu.dot_dimension_numbers<[1], [0], [0], [1], [0, 0, 1, 1], [], []>, precision = #tpu.contract_precision<fp32>} : vector<2x32xf32>, vector<32x128xf32>, vector<2x128xf32> -> vector<2x128xf32>
    %c128 = arith.constant 128 : index
    %c0_23 = arith.constant 0 : index
    %225 = vector.load %arg4[%c128, %c0_23] : memref<136x128xf32, #tpu.memory_space<vmem>>, vector<1x128xf32>
    %226 = vector.broadcast %225 : vector<1x128xf32> to vector<2x128xf32>
    %227 = arith.addf %224, %226 : vector<2x128xf32>
    %c0_24 = arith.constant 0 : index
    %c0_25 = arith.constant 0 : index
    %228 = vector.load %arg8[%c0_24, %c0_25] : memref<2x128xf32, #tpu.memory_space<vmem>>, vector<2x128xf32>
    tpu.vector_store %arg8[%c0_24, %c0_25], %227 {strides = array<i32>} : memref<2x128xf32, #tpu.memory_space<vmem>>, vector<2x128xf32>,
    return
  }
  func.func @transform_0(%arg0: i32) -> (i32, i32) {
    %c0_i32 = arith.constant 0 : i32
    %c0_i32_0 = arith.constant 0 : i32
    return %arg0, %c0_i32 : i32, i32
  }
  func.func @transform_1(%arg0: i32) -> (i32, i32) {
    %c0_i32 = arith.constant 0 : i32
    %c0_i32_0 = arith.constant 0 : i32
    %c0_i32_1 = arith.constant 0 : i32
    return %c0_i32, %c0_i32_0 : i32, i32
  }
  func.func @transform_2(%arg0: i32) -> (i32, i32) {
    %c0_i32 = arith.constant 0 : i32
    %c0_i32_0 = arith.constant 0 : i32
    %c0_i32_1 = arith.constant 0 : i32
    return %c0_i32, %c0_i32_0 : i32, i32
  }
  func.func @transform_3(%arg0: i32) -> (i32, i32) {
    %c0_i32 = arith.constant 0 : i32
    %c0_i32_0 = arith.constant 0 : i32
    %c0_i32_1 = arith.constant 0 : i32
    return %c0_i32, %c0_i32_0 : i32, i32
  }
  func.func @transform_4(%arg0: i32) -> (i32, i32) {
    %c0_i32 = arith.constant 0 : i32
    %c0_i32_0 = arith.constant 0 : i32
    %c0_i32_1 = arith.constant 0 : i32
    return %c0_i32, %c0_i32_0 : i32, i32
  }
  func.func @transform_5(%arg0: i32) -> (i32, i32) {
    %c0_i32 = arith.constant 0 : i32
    %c0_i32_0 = arith.constant 0 : i32
    %c0_i32_1 = arith.constant 0 : i32
    return %c0_i32, %c0_i32_0 : i32, i32
  }
  func.func @transform_6(%arg0: i32) -> (i32, i32) {
    %c0_i32 = arith.constant 0 : i32
    %c0_i32_0 = arith.constant 0 : i32
    %c0_i32_1 = arith.constant 0 : i32
    return %c0_i32, %c0_i32_0 : i32, i32
  }
  func.func @transform_7(%arg0: i32) -> (i32, i32) {
    %c0_i32 = arith.constant 0 : i32
    %c0_i32_0 = arith.constant 0 : i32
    return %arg0, %c0_i32 : i32, i32
  }
}

</mosaic_0001>

<llo_original>
// kernel: tpu_custom_call.1
$region0: #{tpu_custom_call.1}
  #allocation0 [shape = 'u32[]', space=smem, size = 0x4, offset = 0x4, fixed_abs, tag = 'smem constant byte address 0x4 - core index']
  #allocation1 [shape = 'u32[144,128]{1,0:T(1,128)}', space=vmem, size = 0x12000, scoped, tag = 'internal scratch']
  %s0 = inlined_call_operand.hbm [shape: bf16[40,256], index: 0, kind: input, shape index: {}]
  %s1 = inlined_call_operand.hbm [shape: bf16[32,40], index: 1, kind: input, shape index: {}]
  %s2 = inlined_call_operand.hbm [shape: f32[32,34], index: 2, kind: input, shape index: {}]
  %s3 = inlined_call_operand.vmem [shape: f32[136,128], index: 3, kind: input, shape index: {}]
  %s4 = inlined_call_operand.hbm [shape: f32[32,32], index: 4, kind: input, shape index: {}]
  %s5 = inlined_call_operand.vmem [shape: f32[96,32], index: 5, kind: input, shape index: {}]
  %s6 = inlined_call_operand.vmem [shape: f32[2,32], index: 6, kind: input, shape index: {}]
  %s7 = inlined_call_operand.hbm [shape: f32[2,128], index: 7, kind: output, shape index: {}]
  %s8 = sld [smem:[#allocation0]]
  $region54: #{tpu_custom_call.1} parent=0
    _
  %s10 = ssub.s32 1, %s8
  %s11 = scalar_select 0, %s10, %s8
  $region1: #{tpu_custom_call.1} parent=0
    #allocation2 [shape = 'u8[20480]{0}', space=vmem, size = 0x5000, scoped, tag = 'input window, operand 0, single buffered']
    #allocation3 [shape = 's32[1]{0}', space=sflag, size = 0x4, scoped, tag = 'scoped memory for tpu_custom_call.1']
    #allocation4 [shape = 's32[1]{0}', space=sflag, size = 0x4, scoped, tag = 'scoped memory for tpu_custom_call.1']
    #allocation5 [shape = 'u8[8192]{0}', space=vmem, size = 0x2000, scoped, tag = 'input window, operand 1, single buffered']
    #allocation6 [shape = 's32[1]{0}', space=sflag, size = 0x4, scoped, tag = 'scoped memory for tpu_custom_call.1']
    #allocation7 [shape = 'u8[16384]{0}', space=vmem, size = 0x4000, scoped, tag = 'input window, operand 2, single buffered']
    #allocation8 [shape = 'u8[16384]{0}', space=vmem, size = 0x4000, scoped, tag = 'input window, operand 4, single buffered']
    #allocation9 [shape = 's32[1]{0}', space=sflag, size = 0x4, scoped, tag = 'scoped memory for tpu_custom_call.1']
    #allocation10 [shape = 'u8[1024]{0}', space=vmem, size = 0x400, scoped, tag = 'output window, operand 0, single buffered']
    %12 = vsyncpa [#allocation3], 0
    %13 = vsyncpa [#allocation6], 0
    %14 = vsyncpa [#allocation9], 0
    %15 = vsyncpa [#allocation4], 0
    // Predicated region
    $region2: #{tpu_custom_call.1} parent=1 // pred_check
      _
    $region3: #{tpu_custom_call.1} parent=1 // pred_check_branch
      %17 = sbr.rel (0) target = $region5
    $region4: #{tpu_custom_call.1} parent=1 // pred_region
      %s19 = ssub.s32 640, 640
      %20 = vsyncadd [#allocation3], %s19
      %s21 = sshll.u32 [#allocation2], 4
      %s22 = int_to_ptr.vmem [resolvable:$true] %s21
      %27 = dma.hbm_to_vmem [thread:$0]  %s0, 640, %s22, [#allocation3], 128, 128, 8
    $region5: #{tpu_custom_call.1} parent=1 // pred_fallthru
      _
    // Predicated region
    $region6: #{tpu_custom_call.1} parent=1 // pred_check
      _
    $region7: #{tpu_custom_call.1} parent=1 // pred_check_branch
      %29 = sbr.rel (0) target = $region9
    $region8: #{tpu_custom_call.1} parent=1 // pred_region
      %s31 = ssub.s32 256, 256
      %32 = vsyncadd [#allocation6], %s31
      %s33 = sshll.u32 [#allocation5], 4
      %s34 = int_to_ptr.vmem [resolvable:$true] %s33
      %39 = dma.hbm_to_vmem [thread:$0]  %s1, 256, %s34, [#allocation6], 64, 64, 4
    $region9: #{tpu_custom_call.1} parent=1 // pred_fallthru
      _
    // Predicated region
    $region10: #{tpu_custom_call.1} parent=1 // pred_check
      _
    $region11: #{tpu_custom_call.1} parent=1 // pred_check_branch
      %41 = sbr.rel (0) target = $region13
    $region12: #{tpu_custom_call.1} parent=1 // pred_region
      %s43 = ssub.s32 512, 512
      %44 = vsyncadd [#allocation6], %s43
      %s45 = sshll.u32 [#allocation7], 4
      %s46 = int_to_ptr.vmem [resolvable:$true] %s45
      %51 = dma.hbm_to_vmem [thread:$0]  %s2, 512, %s46, [#allocation6], 128, 128, 8
    $region13: #{tpu_custom_call.1} parent=1 // pred_fallthru
      _
    // Predicated region
    $region14: #{tpu_custom_call.1} parent=1 // pred_check
      _
    $region15: #{tpu_custom_call.1} parent=1 // pred_check_branch
      %53 = sbr.rel (0) target = $region17
    $region16: #{tpu_custom_call.1} parent=1 // pred_region
      _
    $region17: #{tpu_custom_call.1} parent=1 // pred_fallthru
      _
    // Predicated region
    $region18: #{tpu_custom_call.1} parent=1 // pred_check
      _
    $region19: #{tpu_custom_call.1} parent=1 // pred_check_branch
      %55 = sbr.rel (0) target = $region21
    $region20: #{tpu_custom_call.1} parent=1 // pred_region
      %s57 = ssub.s32 512, 512
      %58 = vsyncadd [#allocation9], %s57
      %s59 = sshll.u32 [#allocation8], 4
      %s60 = int_to_ptr.vmem [resolvable:$true] %s59
      %65 = dma.hbm_to_vmem [thread:$0]  %s4, 512, %s60, [#allocation9], 128, 128, 8
    $region21: #{tpu_custom_call.1} parent=1 // pred_fallthru
      _
    // Predicated region
    $region22: #{tpu_custom_call.1} parent=1 // pred_check
      _
    $region23: #{tpu_custom_call.1} parent=1 // pred_check_branch
      %67 = sbr.rel (0) target = $region25
    $region24: #{tpu_custom_call.1} parent=1 // pred_region
      _
    $region25: #{tpu_custom_call.1} parent=1 // pred_fallthru
      _
    // Predicated region
    $region26: #{tpu_custom_call.1} parent=1 // pred_check
      _
    $region27: #{tpu_custom_call.1} parent=1 // pred_check_branch
      %69 = sbr.rel (0) target = $region29
    $region28: #{tpu_custom_call.1} parent=1 // pred_region
      _
    $region29: #{tpu_custom_call.1} parent=1 // pred_fallthru
      _
    // Predicated region
    $region30: #{tpu_custom_call.1} parent=1 // pred_check
      _
    $region31: #{tpu_custom_call.1} parent=1 // pred_check_branch
      %71 = sbr.rel (0) target = $region33
    $region32: #{tpu_custom_call.1} parent=1 // pred_region
      %72 = dma.done [#allocation3], 640
    $region33: #{tpu_custom_call.1} parent=1 // pred_fallthru
      _
    // Predicated region
    $region34: #{tpu_custom_call.1} parent=1 // pred_check
      _
    $region35: #{tpu_custom_call.1} parent=1 // pred_check_branch
      %74 = sbr.rel (0) target = $region37
    $region36: #{tpu_custom_call.1} parent=1 // pred_region
      %75 = dma.done [#allocation6], 256
    $region37: #{tpu_custom_call.1} parent=1 // pred_fallthru
      _
    // Predicated region
    $region38: #{tpu_custom_call.1} parent=1 // pred_check
      _
    $region39: #{tpu_custom_call.1} parent=1 // pred_check_branch
      %77 = sbr.rel (0) target = $region41
    $region40: #{tpu_custom_call.1} parent=1 // pred_region
      %78 = dma.done [#allocation6], 512
    $region41: #{tpu_custom_call.1} parent=1 // pred_fallthru
      _
    // Predicated region
    $region42: #{tpu_custom_call.1} parent=1 // pred_check
      _
    $region43: #{tpu_custom_call.1} parent=1 // pred_check_branch
      %80 = sbr.rel (0) target = $region45
    $region44: #{tpu_custom_call.1} parent=1 // pred_region
      %81 = dma.done [#allocation9], 512
    $region45: #{tpu_custom_call.1} parent=1 // pred_fallthru
      _
    %v83 = vld [vmem:[#allocation5] sm:$0xf]
    %v84 = vld [vmem:[#allocation5 + $0x4] sm:$0xf]
    %v85 = vld [vmem:[#allocation5 + $0x8] sm:$0xf]
    %v86 = vld [vmem:[#allocation5 + $0xc] sm:$0xf]
    %v87 = vld [vmem:[#allocation2] sm:$0xff]
    %v88 = vld [vmem:[#allocation2 + $0x8] sm:$0xff]
    %v89 = vld [vmem:[#allocation2 + $0x10] sm:$0xff]
    %v90 = vld [vmem:[#allocation2 + $0x18] sm:$0xff]
    %v91 = vld [vmem:[#allocation2 + $0x20] sm:$0xff]
    %v96 = vunpack.c.l.b16 %v83
    %v97 = vunpack.c.l.b16 %v84
    %v98 = vunpack.c.l.b16 %v85
    %v99 = vunpack.c.l.b16 %v86
    %v100 = vpack.c.b16 %v97, %v96
    %v101 = vpack.c.b16 %v99, %v98
    %v107 = vunpack.c.l.b16 %v87
    %v108 = vunpack.c.h.b16 %v87
    %v109 = vunpack.c.l.b16 %v88
    %v110 = vunpack.c.h.b16 %v88
    %v111 = vunpack.c.l.b16 %v89
    %v112 = vunpack.c.h.b16 %v89
    %v113 = vunpack.c.l.b16 %v90
    %v114 = vunpack.c.h.b16 %v90
    %v115 = vunpack.c.l.b16 %v91
    %v116 = vunpack.c.h.b16 %v91
    %v117 = vpack.c.b16 %v109, %v107
    %v118 = vpack.c.b16 %v110, %v108
    %v119 = vpack.c.b16 %v113, %v111
    %v120 = vpack.c.b16 %v114, %v112
    %v121 = vpack.c.b16 %v115, %v115
    %v122 = vpack.c.b16 %v116, %v116
    %vm127 = vcmask 326656
    %v129 = vsel %vm127, %v100, 0
    %v132 = vsel %vm127, %v101, 0
    %vm134 = vcmask 1043456
    %v136 = vsel %vm134, %v121, 0
    %v139 = vsel %vm134, %v122, 0
    %141 = vmatprep.subr.bf16.mxu0 %v118
    %142 = vmatpush1.bf16.msra.mxu0 %v117
    %143 = vmatprep.subr.bf16.mxu0 %v120
    %144 = vmatpush1.bf16.msra.mxu0 %v119
    %145 = vmatprep.subr.bf16.mxu0 %v139
    %146 = vmatpush1.bf16.msra.mxu0 %v136
    %147 = vmatprep.subr.bf16.mxu0 0
    %148 = vmatpush1.bf16.msra.mxu0 0
    %149 = vmatprep.subr.bf16.mxu0 0
    %150 = vmatpush1.bf16.msra.mxu0 0
    %151 = vmatprep.subr.bf16.mxu0 0
    %152 = vmatpush1.bf16.msra.mxu0 0
    %153 = vmatprep.subr.bf16.mxu0 0
    %154 = vmatpush1.bf16.msra.mxu0 0
    %155 = vmatprep.subr.bf16.mxu0 0
    %156 = vmatpush1.bf16.msra.mxu0 0
    %157 = vmatprep.subr.bf16.mxu0 0
    %158 = vmatpush1.bf16.msra.mxu0 0
    %159 = vmatprep.subr.bf16.mxu0 0
    %160 = vmatpush1.bf16.msra.mxu0 0
    %161 = vmatprep.subr.bf16.mxu0 0
    %162 = vmatpush1.bf16.msra.mxu0 0
    %163 = vmatprep.subr.bf16.mxu0 0
    %164 = vmatpush1.bf16.msra.mxu0 0
    %165 = vmatprep.subr.bf16.mxu0 0
    %166 = vmatpush1.bf16.msra.mxu0 0
    %167 = vmatprep.subr.bf16.mxu0 0
    %168 = vmatpush1.bf16.msra.mxu0 0
    %169 = vmatprep.subr.bf16.mxu0 0
    %170 = vmatpush1.bf16.msra.mxu0 0
    %171 = vmatprep.subr.bf16.mxu0 0
    %172 = vmatpush1.bf16.msra.mxu0 0
    %173 = vmatprep.mubr.bf16.mxu0 0
    %174 = vmatmul.mubr.bf16.gmra.mrb[0].mxu0 %v129
    %v175 = vpop.f32.mrb[0].mxu0
    %v176 = vadd.f32 0.0, %v175
    %v177 = vpop.f32.mrb[0].mxu0
    %v178 = vadd.f32 0.0, %v177
    %v179 = vpop.f32.mrb[0].mxu0
    %v180 = vadd.f32 0.0, %v179
    %v181 = vpop.f32.mrb[0].mxu0
    %v182 = vadd.f32 0.0, %v181
    %183 = vmatprep.mubr.bf16.mxu0 0
    %184 = vmatmul.mubr.bf16.gmra.mrb[0].mxu0 %v132
    %v185 = vpop.f32.mrb[0].mxu0
    %v186 = vadd.f32 0.0, %v185
    %v187 = vpop.f32.mrb[0].mxu0
    %v188 = vadd.f32 0.0, %v187
    %v189 = vpop.f32.mrb[0].mxu0
    %v190 = vadd.f32 0.0, %v189
    %v191 = vpop.f32.mrb[0].mxu0
    %v192 = vadd.f32 0.0, %v191
    %193 = vdwg.mxu0
    %v194 = vld [vmem:[#allocation7] sm:$0xff]
    %v195 = vld [vmem:[#allocation7 + $0x8] sm:$0xff]
    %v196 = vld [vmem:[#allocation7 + $0x10] sm:$0xff]
    %v197 = vld [vmem:[#allocation7 + $0x18] sm:$0xff]
    %199 = vset.pattern.permute.xlu0 0
    %200 = vperm.xlu0 %199, %v194
    %v201 = vpop.permute.xlu0 %200
    %204 = vset.pattern.permute.xlu0 0
    %205 = vperm.xlu0 %204, %v195
    %v206 = vpop.permute.xlu0 %205
    %209 = vset.pattern.permute.xlu0 0
    %210 = vperm.xlu0 %209, %v196
    %v211 = vpop.permute.xlu0 %210
    %214 = vset.pattern.permute.xlu0 0
    %215 = vperm.xlu0 %214, %v197
    %v216 = vpop.permute.xlu0 %215
    %v218 = vmul.f32 %v201, %v176
    %v219 = vmul.f32 %v206, %v180
    %v220 = vmul.f32 %v211, %v186
    %v221 = vmul.f32 %v216, %v190
    %222 = vset.pattern.permute.xlu0 1
    %223 = vperm.xlu0 %222, %v194
    %v224 = vpop.permute.xlu0 %223
    %226 = vset.pattern.permute.xlu0 1
    %227 = vperm.xlu0 %226, %v195
    %v228 = vpop.permute.xlu0 %227
    %230 = vset.pattern.permute.xlu0 1
    %231 = vperm.xlu0 %230, %v196
    %v232 = vpop.permute.xlu0 %231
    %234 = vset.pattern.permute.xlu0 1
    %235 = vperm.xlu0 %234, %v197
    %v236 = vpop.permute.xlu0 %235
    %v238 = vmul.f32 %v224, %v176
    %v239 = vmul.f32 %v224, %v178
    %v240 = vmul.f32 %v228, %v180
    %v241 = vmul.f32 %v228, %v182
    %v242 = vmul.f32 %v232, %v186
    %v243 = vmul.f32 %v232, %v188
    %v244 = vmul.f32 %v236, %v190
    %v245 = vmul.f32 %v236, %v192
    %254 = vrot.lane.b32.xlu0 %v238, 127
    %v255 = vpop.permute.xlu0 %254
    %256 = vrot.lane.b32.xlu0 %v239, 127
    %v257 = vpop.permute.xlu0 %256
    %258 = vrot.lane.b32.xlu0 %v240, 127
    %v259 = vpop.permute.xlu0 %258
    %260 = vrot.lane.b32.xlu0 %v241, 127
    %v261 = vpop.permute.xlu0 %260
    %262 = vrot.lane.b32.xlu0 %v242, 127
    %v263 = vpop.permute.xlu0 %262
    %264 = vrot.lane.b32.xlu0 %v243, 127
    %v265 = vpop.permute.xlu0 %264
    %266 = vrot.lane.b32.xlu0 %v244, 127
    %v267 = vpop.permute.xlu0 %266
    %268 = vrot.lane.b32.xlu0 %v245, 127
    %v269 = vpop.permute.xlu0 %268
    %vm270 = vcmask 1039360
    %v271 = vsel %vm270, %v255, %v257
    %v272 = vsel %vm270, %v259, %v261
    %v273 = vsel %vm270, %v263, %v265
    %v274 = vsel %vm270, %v267, %v269
    %v279 = vadd.f32 %v218, %v271
    %v280 = vadd.f32 %v219, %v272
    %v281 = vadd.f32 %v220, %v273
    %v282 = vadd.f32 %v221, %v274
    %283 = vset.pattern.permute.xlu0 2
    %284 = vperm.xlu0 %283, %v194
    %v285 = vpop.permute.xlu0 %284
    %287 = vset.pattern.permute.xlu0 2
    %288 = vperm.xlu0 %287, %v195
    %v289 = vpop.permute.xlu0 %288
    %291 = vset.pattern.permute.xlu0 2
    %292 = vperm.xlu0 %291, %v196
    %v293 = vpop.permute.xlu0 %292
    %295 = vset.pattern.permute.xlu0 2
    %296 = vperm.xlu0 %295, %v197
    %v297 = vpop.permute.xlu0 %296
    %v299 = vmul.f32 %v285, %v176
    %v300 = vmul.f32 %v285, %v178
    %v301 = vmul.f32 %v289, %v180
    %v302 = vmul.f32 %v289, %v182
    %v303 = vmul.f32 %v293, %v186
    %v304 = vmul.f32 %v293, %v188
    %v305 = vmul.f32 %v297, %v190
    %v306 = vmul.f32 %v297, %v192
    %315 = vrot.lane.b32.xlu0 %v299, 126
    %v316 = vpop.permute.xlu0 %315
    %317 = vrot.lane.b32.xlu0 %v300, 126
    %v318 = vpop.permute.xlu0 %317
    %319 = vrot.lane.b32.xlu0 %v301, 126
    %v320 = vpop.permute.xlu0 %319
    %321 = vrot.lane.b32.xlu0 %v302, 126
    %v322 = vpop.permute.xlu0 %321
    %323 = vrot.lane.b32.xlu0 %v303, 126
    %v324 = vpop.permute.xlu0 %323
    %325 = vrot.lane.b32.xlu0 %v304, 126
    %v326 = vpop.permute.xlu0 %325
    %327 = vrot.lane.b32.xlu0 %v305, 126
    %v328 = vpop.permute.xlu0 %327
    %329 = vrot.lane.b32.xlu0 %v306, 126
    %v330 = vpop.permute.xlu0 %329
    %vm331 = vcmask 1031168
    %v332 = vsel %vm331, %v316, %v318
    %v333 = vsel %vm331, %v320, %v322
    %v334 = vsel %vm331, %v324, %v326
    %v335 = vsel %vm331, %v328, %v330
    %v340 = vadd.f32 %v279, %v332
    %v341 = vadd.f32 %v280, %v333
    %v342 = vadd.f32 %v281, %v334
    %v343 = vadd.f32 %v282, %v335
    %344 = vset.pattern.permute.xlu0 3
    %345 = vperm.xlu0 %344, %v194
    %v346 = vpop.permute.xlu0 %345
    %348 = vset.pattern.permute.xlu0 3
    %349 = vperm.xlu0 %348, %v195
    %v350 = vpop.permute.xlu0 %349
    %352 = vset.pattern.permute.xlu0 3
    %353 = vperm.xlu0 %352, %v196
    %v354 = vpop.permute.xlu0 %353
    %356 = vset.pattern.permute.xlu0 3
    %357 = vperm.xlu0 %356, %v197
    %v358 = vpop.permute.xlu0 %357
    %v360 = vmul.f32 %v346, %v176
    %v361 = vmul.f32 %v346, %v178
    %v362 = vmul.f32 %v350, %v180
    %v363 = vmul.f32 %v350, %v182
    %v364 = vmul.f32 %v354, %v186
    %v365 = vmul.f32 %v354, %v188
    %v366 = vmul.f32 %v358, %v190
    %v367 = vmul.f32 %v358, %v192
    %376 = vrot.lane.b32.xlu0 %v360, 125
    %v377 = vpop.permute.xlu0 %376
    %378 = vrot.lane.b32.xlu0 %v361, 125
    %v379 = vpop.permute.xlu0 %378
    %380 = vrot.lane.b32.xlu0 %v362, 125
    %v381 = vpop.permute.xlu0 %380
    %382 = vrot.lane.b32.xlu0 %v363, 125
    %v383 = vpop.permute.xlu0 %382
    %384 = vrot.lane.b32.xlu0 %v364, 125
    %v385 = vpop.permute.xlu0 %384
    %386 = vrot.lane.b32.xlu0 %v365, 125
    %v387 = vpop.permute.xlu0 %386
    %388 = vrot.lane.b32.xlu0 %v366, 125
    %v389 = vpop.permute.xlu0 %388
    %390 = vrot.lane.b32.xlu0 %v367, 125
    %v391 = vpop.permute.xlu0 %390
    %vm392 = vcmask 1022976
    %v393 = vsel %vm392, %v377, %v379
    %v394 = vsel %vm392, %v381, %v383
    %v395 = vsel %vm392, %v385, %v387
    %v396 = vsel %vm392, %v389, %v391
    %v401 = vadd.f32 %v340, %v393
    %v402 = vadd.f32 %v341, %v394
    %v403 = vadd.f32 %v342, %v395
    %v404 = vadd.f32 %v343, %v396
    %405 = vset.pattern.permute.xlu0 4
    %406 = vperm.xlu0 %405, %v194
    %v407 = vpop.permute.xlu0 %406
    %409 = vset.pattern.permute.xlu0 4
    %410 = vperm.xlu0 %409, %v195
    %v411 = vpop.permute.xlu0 %410
    %413 = vset.pattern.permute.xlu0 4
    %414 = vperm.xlu0 %413, %v196
    %v415 = vpop.permute.xlu0 %414
    %417 = vset.pattern.permute.xlu0 4
    %418 = vperm.xlu0 %417, %v197
    %v419 = vpop.permute.xlu0 %418
    %v421 = vmul.f32 %v407, %v176
    %v422 = vmul.f32 %v407, %v178
    %v423 = vmul.f32 %v411, %v180
    %v424 = vmul.f32 %v411, %v182
    %v425 = vmul.f32 %v415, %v186
    %v426 = vmul.f32 %v415, %v188
    %v427 = vmul.f32 %v419, %v190
    %v428 = vmul.f32 %v419, %v192
    %437 = vrot.lane.b32.xlu0 %v421, 124
    %v438 = vpop.permute.xlu0 %437
    %439 = vrot.lane.b32.xlu0 %v422, 124
    %v440 = vpop.permute.xlu0 %439
    %441 = vrot.lane.b32.xlu0 %v423, 124
    %v442 = vpop.permute.xlu0 %441
    %443 = vrot.lane.b32.xlu0 %v424, 124
    %v444 = vpop.permute.xlu0 %443
    %445 = vrot.lane.b32.xlu0 %v425, 124
    %v446 = vpop.permute.xlu0 %445
    %447 = vrot.lane.b32.xlu0 %v426, 124
    %v448 = vpop.permute.xlu0 %447
    %449 = vrot.lane.b32.xlu0 %v427, 124
    %v450 = vpop.permute.xlu0 %449
    %451 = vrot.lane.b32.xlu0 %v428, 124
    %v452 = vpop.permute.xlu0 %451
    %vm453 = vcmask 1014784
    %v454 = vsel %vm453, %v438, %v440
    %v455 = vsel %vm453, %v442, %v444
    %v456 = vsel %vm453, %v446, %v448
    %v457 = vsel %vm453, %v450, %v452
    %v462 = vadd.f32 %v401, %v454
    %v463 = vadd.f32 %v402, %v455
    %v464 = vadd.f32 %v403, %v456
    %v465 = vadd.f32 %v404, %v457
    %466 = vset.pattern.permute.xlu0 5
    %467 = vperm.xlu0 %466, %v194
    %v468 = vpop.permute.xlu0 %467
    %470 = vset.pattern.permute.xlu0 5
    %471 = vperm.xlu0 %470, %v195
    %v472 = vpop.permute.xlu0 %471
    %474 = vset.pattern.permute.xlu0 5
    %475 = vperm.xlu0 %474, %v196
    %v476 = vpop.permute.xlu0 %475
    %478 = vset.pattern.permute.xlu0 5
    %479 = vperm.xlu0 %478, %v197
    %v480 = vpop.permute.xlu0 %479
    %v482 = vmul.f32 %v468, %v176
    %v483 = vmul.f32 %v468, %v178
    %v484 = vmul.f32 %v472, %v180
    %v485 = vmul.f32 %v472, %v182
    %v486 = vmul.f32 %v476, %v186
    %v487 = vmul.f32 %v476, %v188
    %v488 = vmul.f32 %v480, %v190
    %v489 = vmul.f32 %v480, %v192
    %498 = vrot.lane.b32.xlu0 %v482, 123
    %v499 = vpop.permute.xlu0 %498
    %500 = vrot.lane.b32.xlu0 %v483, 123
    %v501 = vpop.permute.xlu0 %500
    %502 = vrot.lane.b32.xlu0 %v484, 123
    %v503 = vpop.permute.xlu0 %502
    %504 = vrot.lane.b32.xlu0 %v485, 123
    %v505 = vpop.permute.xlu0 %504
    %506 = vrot.lane.b32.xlu0 %v486, 123
    %v507 = vpop.permute.xlu0 %506
    %508 = vrot.lane.b32.xlu0 %v487, 123
    %v509 = vpop.permute.xlu0 %508
    %510 = vrot.lane.b32.xlu0 %v488, 123
    %v511 = vpop.permute.xlu0 %510
    %512 = vrot.lane.b32.xlu0 %v489, 123
    %v513 = vpop.permute.xlu0 %512
    %vm514 = vcmask 1006592
    %v515 = vsel %vm514, %v499, %v501
    %v516 = vsel %vm514, %v503, %v505
    %v517 = vsel %vm514, %v507, %v509
    %v518 = vsel %vm514, %v511, %v513
    %v523 = vadd.f32 %v462, %v515
    %v524 = vadd.f32 %v463, %v516
    %v525 = vadd.f32 %v464, %v517
    %v526 = vadd.f32 %v465, %v518
    %527 = vset.pattern.permute.xlu0 6
    %528 = vperm.xlu0 %527, %v194
    %v529 = vpop.permute.xlu0 %528
    %531 = vset.pattern.permute.xlu0 6
    %532 = vperm.xlu0 %531, %v195
    %v533 = vpop.permute.xlu0 %532
    %535 = vset.pattern.permute.xlu0 6
    %536 = vperm.xlu0 %535, %v196
    %v537 = vpop.permute.xlu0 %536
    %539 = vset.pattern.permute.xlu0 6
    %540 = vperm.xlu0 %539, %v197
    %v541 = vpop.permute.xlu0 %540
    %v543 = vmul.f32 %v529, %v176
    %v544 = vmul.f32 %v529, %v178
    %v545 = vmul.f32 %v533, %v180
    %v546 = vmul.f32 %v533, %v182
    %v547 = vmul.f32 %v537, %v186
    %v548 = vmul.f32 %v537, %v188
    %v549 = vmul.f32 %v541, %v190
    %v550 = vmul.f32 %v541, %v192
    %559 = vrot.lane.b32.xlu0 %v543, 122
    %v560 = vpop.permute.xlu0 %559
    %561 = vrot.lane.b32.xlu0 %v544, 122
    %v562 = vpop.permute.xlu0 %561
    %563 = vrot.lane.b32.xlu0 %v545, 122
    %v564 = vpop.permute.xlu0 %563
    %565 = vrot.lane.b32.xlu0 %v546, 122
    %v566 = vpop.permute.xlu0 %565
    %567 = vrot.lane.b32.xlu0 %v547, 122
    %v568 = vpop.permute.xlu0 %567
    %569 = vrot.lane.b32.xlu0 %v548, 122
    %v570 = vpop.permute.xlu0 %569
    %571 = vrot.lane.b32.xlu0 %v549, 122
    %v572 = vpop.permute.xlu0 %571
    %573 = vrot.lane.b32.xlu0 %v550, 122
    %v574 = vpop.permute.xlu0 %573
    %vm575 = vcmask 998400
    %v576 = vsel %vm575, %v560, %v562
    %v577 = vsel %vm575, %v564, %v566
    %v578 = vsel %vm575, %v568, %v570
    %v579 = vsel %vm575, %v572, %v574
    %v584 = vadd.f32 %v523, %v576
    %v585 = vadd.f32 %v524, %v577
    %v586 = vadd.f32 %v525, %v578
    %v587 = vadd.f32 %v526, %v579
    %588 = vset.pattern.permute.xlu0 7
    %589 = vperm.xlu0 %588, %v194
    %v590 = vpop.permute.xlu0 %589
    %592 = vset.pattern.permute.xlu0 7
    %593 = vperm.xlu0 %592, %v195
    %v594 = vpop.permute.xlu0 %593
    %596 = vset.pattern.permute.xlu0 7
    %597 = vperm.xlu0 %596, %v196
    %v598 = vpop.permute.xlu0 %597
    %600 = vset.pattern.permute.xlu0 7
    %601 = vperm.xlu0 %600, %v197
    %v602 = vpop.permute.xlu0 %601
    %v604 = vmul.f32 %v590, %v176
    %v605 = vmul.f32 %v590, %v178
    %v606 = vmul.f32 %v594, %v180
    %v607 = vmul.f32 %v594, %v182
    %v608 = vmul.f32 %v598, %v186
    %v609 = vmul.f32 %v598, %v188
    %v610 = vmul.f32 %v602, %v190
    %v611 = vmul.f32 %v602, %v192
    %620 = vrot.lane.b32.xlu0 %v604, 121
    %v621 = vpop.permute.xlu0 %620
    %622 = vrot.lane.b32.xlu0 %v605, 121
    %v623 = vpop.permute.xlu0 %622
    %624 = vrot.lane.b32.xlu0 %v606, 121
    %v625 = vpop.permute.xlu0 %624
    %626 = vrot.lane.b32.xlu0 %v607, 121
    %v627 = vpop.permute.xlu0 %626
    %628 = vrot.lane.b32.xlu0 %v608, 121
    %v629 = vpop.permute.xlu0 %628
    %630 = vrot.lane.b32.xlu0 %v609, 121
    %v631 = vpop.permute.xlu0 %630
    %632 = vrot.lane.b32.xlu0 %v610, 121
    %v633 = vpop.permute.xlu0 %632
    %634 = vrot.lane.b32.xlu0 %v611, 121
    %v635 = vpop.permute.xlu0 %634
    %vm636 = vcmask 990208
    %v637 = vsel %vm636, %v621, %v623
    %v638 = vsel %vm636, %v625, %v627
    %v639 = vsel %vm636, %v629, %v631
    %v640 = vsel %vm636, %v633, %v635
    %v645 = vadd.f32 %v584, %v637
    %v646 = vadd.f32 %v585, %v638
    %v647 = vadd.f32 %v586, %v639
    %v648 = vadd.f32 %v587, %v640
    %649 = vset.pattern.permute.xlu0 8
    %650 = vperm.xlu0 %649, %v194
    %v651 = vpop.permute.xlu0 %650
    %653 = vset.pattern.permute.xlu0 8
    %654 = vperm.xlu0 %653, %v195
    %v655 = vpop.permute.xlu0 %654
    %657 = vset.pattern.permute.xlu0 8
    %658 = vperm.xlu0 %657, %v196
    %v659 = vpop.permute.xlu0 %658
    %661 = vset.pattern.permute.xlu0 8
    %662 = vperm.xlu0 %661, %v197
    %v663 = vpop.permute.xlu0 %662
    %v665 = vmul.f32 %v651, %v176
    %v666 = vmul.f32 %v651, %v178
    %v667 = vmul.f32 %v655, %v180
    %v668 = vmul.f32 %v655, %v182
    %v669 = vmul.f32 %v659, %v186
    %v670 = vmul.f32 %v659, %v188
    %v671 = vmul.f32 %v663, %v190
    %v672 = vmul.f32 %v663, %v192
    %681 = vrot.lane.b32.xlu0 %v665, 120
    %v682 = vpop.permute.xlu0 %681
    %683 = vrot.lane.b32.xlu0 %v666, 120
    %v684 = vpop.permute.xlu0 %683
    %685 = vrot.lane.b32.xlu0 %v667, 120
    %v686 = vpop.permute.xlu0 %685
    %687 = vrot.lane.b32.xlu0 %v668, 120
    %v688 = vpop.permute.xlu0 %687
    %689 = vrot.lane.b32.xlu0 %v669, 120
    %v690 = vpop.permute.xlu0 %689
    %691 = vrot.lane.b32.xlu0 %v670, 120
    %v692 = vpop.permute.xlu0 %691
    %693 = vrot.lane.b32.xlu0 %v671, 120
    %v694 = vpop.permute.xlu0 %693
    %695 = vrot.lane.b32.xlu0 %v672, 120
    %v696 = vpop.permute.xlu0 %695
    %vm697 = vcmask 982016
    %v698 = vsel %vm697, %v682, %v684
    %v699 = vsel %vm697, %v686, %v688
    %v700 = vsel %vm697, %v690, %v692
    %v701 = vsel %vm697, %v694, %v696
    %v706 = vadd.f32 %v645, %v698
    %v707 = vadd.f32 %v646, %v699
    %v708 = vadd.f32 %v647, %v700
    %v709 = vadd.f32 %v648, %v701
    %710 = vset.pattern.permute.xlu0 9
    %711 = vperm.xlu0 %710, %v194
    %v712 = vpop.permute.xlu0 %711
    %714 = vset.pattern.permute.xlu0 9
    %715 = vperm.xlu0 %714, %v195
    %v716 = vpop.permute.xlu0 %715
    %718 = vset.pattern.permute.xlu0 9
    %719 = vperm.xlu0 %718, %v196
    %v720 = vpop.permute.xlu0 %719
    %722 = vset.pattern.permute.xlu0 9
    %723 = vperm.xlu0 %722, %v197
    %v724 = vpop.permute.xlu0 %723
    %v726 = vmul.f32 %v712, %v176
    %v727 = vmul.f32 %v712, %v178
    %v728 = vmul.f32 %v716, %v180
    %v729 = vmul.f32 %v716, %v182
    %v730 = vmul.f32 %v720, %v186
    %v731 = vmul.f32 %v720, %v188
    %v732 = vmul.f32 %v724, %v190
    %v733 = vmul.f32 %v724, %v192
    %742 = vrot.lane.b32.xlu0 %v726, 119
    %v743 = vpop.permute.xlu0 %742
    %744 = vrot.lane.b32.xlu0 %v727, 119
    %v745 = vpop.permute.xlu0 %744
    %746 = vrot.lane.b32.xlu0 %v728, 119
    %v747 = vpop.permute.xlu0 %746
    %748 = vrot.lane.b32.xlu0 %v729, 119
    %v749 = vpop.permute.xlu0 %748
    %750 = vrot.lane.b32.xlu0 %v730, 119
    %v751 = vpop.permute.xlu0 %750
    %752 = vrot.lane.b32.xlu0 %v731, 119
    %v753 = vpop.permute.xlu0 %752
    %754 = vrot.lane.b32.xlu0 %v732, 119
    %v755 = vpop.permute.xlu0 %754
    %756 = vrot.lane.b32.xlu0 %v733, 119
    %v757 = vpop.permute.xlu0 %756
    %vm758 = vcmask 973824
    %v759 = vsel %vm758, %v743, %v745
    %v760 = vsel %vm758, %v747, %v749
    %v761 = vsel %vm758, %v751, %v753
    %v762 = vsel %vm758, %v755, %v757
    %v767 = vadd.f32 %v706, %v759
    %v768 = vadd.f32 %v707, %v760
    %v769 = vadd.f32 %v708, %v761
    %v770 = vadd.f32 %v709, %v762
    %771 = vset.pattern.permute.xlu0 10
    %772 = vperm.xlu0 %771, %v194
    %v773 = vpop.permute.xlu0 %772
    %775 = vset.pattern.permute.xlu0 10
    %776 = vperm.xlu0 %775, %v195
    %v777 = vpop.permute.xlu0 %776
    %779 = vset.pattern.permute.xlu0 10
    %780 = vperm.xlu0 %779, %v196
    %v781 = vpop.permute.xlu0 %780
    %783 = vset.pattern.permute.xlu0 10
    %784 = vperm.xlu0 %783, %v197
    %v785 = vpop.permute.xlu0 %784
    %v787 = vmul.f32 %v773, %v176
    %v788 = vmul.f32 %v773, %v178
    %v789 = vmul.f32 %v777, %v180
    %v790 = vmul.f32 %v777, %v182
    %v791 = vmul.f32 %v781, %v186
    %v792 = vmul.f32 %v781, %v188
    %v793 = vmul.f32 %v785, %v190
    %v794 = vmul.f32 %v785, %v192
    %803 = vrot.lane.b32.xlu0 %v787, 118
    %v804 = vpop.permute.xlu0 %803
    %805 = vrot.lane.b32.xlu0 %v788, 118
    %v806 = vpop.permute.xlu0 %805
    %807 = vrot.lane.b32.xlu0 %v789, 118
    %v808 = vpop.permute.xlu0 %807
    %809 = vrot.lane.b32.xlu0 %v790, 118
    %v810 = vpop.permute.xlu0 %809
    %811 = vrot.lane.b32.xlu0 %v791, 118
    %v812 = vpop.permute.xlu0 %811
    %813 = vrot.lane.b32.xlu0 %v792, 118
    %v814 = vpop.permute.xlu0 %813
    %815 = vrot.lane.b32.xlu0 %v793, 118
    %v816 = vpop.permute.xlu0 %815
    %817 = vrot.lane.b32.xlu0 %v794, 118
    %v818 = vpop.permute.xlu0 %817
    %vm819 = vcmask 965632
    %v820 = vsel %vm819, %v804, %v806
    %v821 = vsel %vm819, %v808, %v810
    %v822 = vsel %vm819, %v812, %v814
    %v823 = vsel %vm819, %v816, %v818
    %v828 = vadd.f32 %v767, %v820
    %v829 = vadd.f32 %v768, %v821
    %v830 = vadd.f32 %v769, %v822
    %v831 = vadd.f32 %v770, %v823
    %832 = vset.pattern.permute.xlu0 11
    %833 = vperm.xlu0 %832, %v194
    %v834 = vpop.permute.xlu0 %833
    %836 = vset.pattern.permute.xlu0 11
    %837 = vperm.xlu0 %836, %v195
    %v838 = vpop.permute.xlu0 %837
    %840 = vset.pattern.permute.xlu0 11
    %841 = vperm.xlu0 %840, %v196
    %v842 = vpop.permute.xlu0 %841
    %844 = vset.pattern.permute.xlu0 11
    %845 = vperm.xlu0 %844, %v197
    %v846 = vpop.permute.xlu0 %845
    %v848 = vmul.f32 %v834, %v176
    %v849 = vmul.f32 %v834, %v178
    %v850 = vmul.f32 %v838, %v180
    %v851 = vmul.f32 %v838, %v182
    %v852 = vmul.f32 %v842, %v186
    %v853 = vmul.f32 %v842, %v188
    %v854 = vmul.f32 %v846, %v190
    %v855 = vmul.f32 %v846, %v192
    %864 = vrot.lane.b32.xlu0 %v848, 117
    %v865 = vpop.permute.xlu0 %864
    %866 = vrot.lane.b32.xlu0 %v849, 117
    %v867 = vpop.permute.xlu0 %866
    %868 = vrot.lane.b32.xlu0 %v850, 117
    %v869 = vpop.permute.xlu0 %868
    %870 = vrot.lane.b32.xlu0 %v851, 117
    %v871 = vpop.permute.xlu0 %870
    %872 = vrot.lane.b32.xlu0 %v852, 117
    %v873 = vpop.permute.xlu0 %872
    %874 = vrot.lane.b32.xlu0 %v853, 117
    %v875 = vpop.permute.xlu0 %874
    %876 = vrot.lane.b32.xlu0 %v854, 117
    %v877 = vpop.permute.xlu0 %876
    %878 = vrot.lane.b32.xlu0 %v855, 117
    %v879 = vpop.permute.xlu0 %878
    %vm880 = vcmask 957440
    %v881 = vsel %vm880, %v865, %v867
    %v882 = vsel %vm880, %v869, %v871
    %v883 = vsel %vm880, %v873, %v875
    %v884 = vsel %vm880, %v877, %v879
    %v889 = vadd.f32 %v828, %v881
    %v890 = vadd.f32 %v829, %v882
    %v891 = vadd.f32 %v830, %v883
    %v892 = vadd.f32 %v831, %v884
    %893 = vset.pattern.permute.xlu0 12
    %894 = vperm.xlu0 %893, %v194
    %v895 = vpop.permute.xlu0 %894
    %897 = vset.pattern.permute.xlu0 12
    %898 = vperm.xlu0 %897, %v195
    %v899 = vpop.permute.xlu0 %898
    %901 = vset.pattern.permute.xlu0 12
    %902 = vperm.xlu0 %901, %v196
    %v903 = vpop.permute.xlu0 %902
    %905 = vset.pattern.permute.xlu0 12
    %906 = vperm.xlu0 %905, %v197
    %v907 = vpop.permute.xlu0 %906
    %v909 = vmul.f32 %v895, %v176
    %v910 = vmul.f32 %v895, %v178
    %v911 = vmul.f32 %v899, %v180
    %v912 = vmul.f32 %v899, %v182
    %v913 = vmul.f32 %v903, %v186
    %v914 = vmul.f32 %v903, %v188
    %v915 = vmul.f32 %v907, %v190
    %v916 = vmul.f32 %v907, %v192
    %925 = vrot.lane.b32.xlu0 %v909, 116
    %v926 = vpop.permute.xlu0 %925
    %927 = vrot.lane.b32.xlu0 %v910, 116
    %v928 = vpop.permute.xlu0 %927
    %929 = vrot.lane.b32.xlu0 %v911, 116
    %v930 = vpop.permute.xlu0 %929
    %931 = vrot.lane.b32.xlu0 %v912, 116
    %v932 = vpop.permute.xlu0 %931
    %933 = vrot.lane.b32.xlu0 %v913, 116
    %v934 = vpop.permute.xlu0 %933
    %935 = vrot.lane.b32.xlu0 %v914, 116
    %v936 = vpop.permute.xlu0 %935
    %937 = vrot.lane.b32.xlu0 %v915, 116
    %v938 = vpop.permute.xlu0 %937
    %939 = vrot.lane.b32.xlu0 %v916, 116
    %v940 = vpop.permute.xlu0 %939
    %vm941 = vcmask 949248
    %v942 = vsel %vm941, %v926, %v928
    %v943 = vsel %vm941, %v930, %v932
    %v944 = vsel %vm941, %v934, %v936
    %v945 = vsel %vm941, %v938, %v940
    %v950 = vadd.f32 %v889, %v942
    %v951 = vadd.f32 %v890, %v943
    %v952 = vadd.f32 %v891, %v944
    %v953 = vadd.f32 %v892, %v945
    %954 = vset.pattern.permute.xlu0 13
    %955 = vperm.xlu0 %954, %v194
    %v956 = vpop.permute.xlu0 %955
    %958 = vset.pattern.permute.xlu0 13
    %959 = vperm.xlu0 %958, %v195
    %v960 = vpop.permute.xlu0 %959
    %962 = vset.pattern.permute.xlu0 13
    %963 = vperm.xlu0 %962, %v196
    %v964 = vpop.permute.xlu0 %963
    %966 = vset.pattern.permute.xlu0 13
    %967 = vperm.xlu0 %966, %v197
    %v968 = vpop.permute.xlu0 %967
    %v970 = vmul.f32 %v956, %v176
    %v971 = vmul.f32 %v956, %v178
    %v972 = vmul.f32 %v960, %v180
    %v973 = vmul.f32 %v960, %v182
    %v974 = vmul.f32 %v964, %v186
    %v975 = vmul.f32 %v964, %v188
    %v976 = vmul.f32 %v968, %v190
    %v977 = vmul.f32 %v968, %v192
    %986 = vrot.lane.b32.xlu0 %v970, 115
    %v987 = vpop.permute.xlu0 %986
    %988 = vrot.lane.b32.xlu0 %v971, 115
    %v989 = vpop.permute.xlu0 %988
    %990 = vrot.lane.b32.xlu0 %v972, 115
    %v991 = vpop.permute.xlu0 %990
    %992 = vrot.lane.b32.xlu0 %v973, 115
    %v993 = vpop.permute.xlu0 %992
    %994 = vrot.lane.b32.xlu0 %v974, 115
    %v995 = vpop.permute.xlu0 %994
    %996 = vrot.lane.b32.xlu0 %v975, 115
    %v997 = vpop.permute.xlu0 %996
    %998 = vrot.lane.b32.xlu0 %v976, 115
    %v999 = vpop.permute.xlu0 %998
    %1000 = vrot.lane.b32.xlu0 %v977, 115
    %v1001 = vpop.permute.xlu0 %1000
    %vm1002 = vcmask 941056
    %v1003 = vsel %vm1002, %v987, %v989
    %v1004 = vsel %vm1002, %v991, %v993
    %v1005 = vsel %vm1002, %v995, %v997
    %v1006 = vsel %vm1002, %v999, %v1001
    %v1011 = vadd.f32 %v950, %v1003
    %v1012 = vadd.f32 %v951, %v1004
    %v1013 = vadd.f32 %v952, %v1005
    %v1014 = vadd.f32 %v953, %v1006
    %1015 = vset.pattern.permute.xlu0 14
    %1016 = vperm.xlu0 %1015, %v194
    %v1017 = vpop.permute.xlu0 %1016
    %1019 = vset.pattern.permute.xlu0 14
    %1020 = vperm.xlu0 %1019, %v195
    %v1021 = vpop.permute.xlu0 %1020
    %1023 = vset.pattern.permute.xlu0 14
    %1024 = vperm.xlu0 %1023, %v196
    %v1025 = vpop.permute.xlu0 %1024
    %1027 = vset.pattern.permute.xlu0 14
    %1028 = vperm.xlu0 %1027, %v197
    %v1029 = vpop.permute.xlu0 %1028
    %v1031 = vmul.f32 %v1017, %v176
    %v1032 = vmul.f32 %v1017, %v178
    %v1033 = vmul.f32 %v1021, %v180
    %v1034 = vmul.f32 %v1021, %v182
    %v1035 = vmul.f32 %v1025, %v186
    %v1036 = vmul.f32 %v1025, %v188
    %v1037 = vmul.f32 %v1029, %v190
    %v1038 = vmul.f32 %v1029, %v192
    %1047 = vrot.lane.b32.xlu0 %v1031, 114
    %v1048 = vpop.permute.xlu0 %1047
    %1049 = vrot.lane.b32.xlu0 %v1032, 114
    %v1050 = vpop.permute.xlu0 %1049
    %1051 = vrot.lane.b32.xlu0 %v1033, 114
    %v1052 = vpop.permute.xlu0 %1051
    %1053 = vrot.lane.b32.xlu0 %v1034, 114
    %v1054 = vpop.permute.xlu0 %1053
    %1055 = vrot.lane.b32.xlu0 %v1035, 114
    %v1056 = vpop.permute.xlu0 %1055
    %1057 = vrot.lane.b32.xlu0 %v1036, 114
    %v1058 = vpop.permute.xlu0 %1057
    %1059 = vrot.lane.b32.xlu0 %v1037, 114
    %v1060 = vpop.permute.xlu0 %1059
    %1061 = vrot.lane.b32.xlu0 %v1038, 114
    %v1062 = vpop.permute.xlu0 %1061
    %vm1063 = vcmask 932864
    %v1064 = vsel %vm1063, %v1048, %v1050
    %v1065 = vsel %vm1063, %v1052, %v1054
    %v1066 = vsel %vm1063, %v1056, %v1058
    %v1067 = vsel %vm1063, %v1060, %v1062
    %v1072 = vadd.f32 %v1011, %v1064
    %v1073 = vadd.f32 %v1012, %v1065
    %v1074 = vadd.f32 %v1013, %v1066
    %v1075 = vadd.f32 %v1014, %v1067
    %1076 = vset.pattern.permute.xlu0 15
    %1077 = vperm.xlu0 %1076, %v194
    %v1078 = vpop.permute.xlu0 %1077
    %1080 = vset.pattern.permute.xlu0 15
    %1081 = vperm.xlu0 %1080, %v195
    %v1082 = vpop.permute.xlu0 %1081
    %1084 = vset.pattern.permute.xlu0 15
    %1085 = vperm.xlu0 %1084, %v196
    %v1086 = vpop.permute.xlu0 %1085
    %1088 = vset.pattern.permute.xlu0 15
    %1089 = vperm.xlu0 %1088, %v197
    %v1090 = vpop.permute.xlu0 %1089
    %v1092 = vmul.f32 %v1078, %v176
    %v1093 = vmul.f32 %v1078, %v178
    %v1094 = vmul.f32 %v1082, %v180
    %v1095 = vmul.f32 %v1082, %v182
    %v1096 = vmul.f32 %v1086, %v186
    %v1097 = vmul.f32 %v1086, %v188
    %v1098 = vmul.f32 %v1090, %v190
    %v1099 = vmul.f32 %v1090, %v192
    %1108 = vrot.lane.b32.xlu0 %v1092, 113
    %v1109 = vpop.permute.xlu0 %1108
    %1110 = vrot.lane.b32.xlu0 %v1093, 113
    %v1111 = vpop.permute.xlu0 %1110
    %1112 = vrot.lane.b32.xlu0 %v1094, 113
    %v1113 = vpop.permute.xlu0 %1112
    %1114 = vrot.lane.b32.xlu0 %v1095, 113
    %v1115 = vpop.permute.xlu0 %1114
    %1116 = vrot.lane.b32.xlu0 %v1096, 113
    %v1117 = vpop.permute.xlu0 %1116
    %1118 = vrot.lane.b32.xlu0 %v1097, 113
    %v1119 = vpop.permute.xlu0 %1118
    %1120 = vrot.lane.b32.xlu0 %v1098, 113
    %v1121 = vpop.permute.xlu0 %1120
    %1122 = vrot.lane.b32.xlu0 %v1099, 113
    %v1123 = vpop.permute.xlu0 %1122
    %vm1124 = vcmask 924672
    %v1125 = vsel %vm1124, %v1109, %v1111
    %v1126 = vsel %vm1124, %v1113, %v1115
    %v1127 = vsel %vm1124, %v1117, %v1119
    %v1128 = vsel %vm1124, %v1121, %v1123
    %v1133 = vadd.f32 %v1072, %v1125
    %v1134 = vadd.f32 %v1073, %v1126
    %v1135 = vadd.f32 %v1074, %v1127
    %v1136 = vadd.f32 %v1075, %v1128
    %1137 = vset.pattern.permute.xlu0 32
    %1138 = vperm.xlu0 %1137, %v194
    %v1139 = vpop.permute.xlu0 %1138
    %1141 = vset.pattern.permute.xlu0 32
    %1142 = vperm.xlu0 %1141, %v195
    %v1143 = vpop.permute.xlu0 %1142
    %1145 = vset.pattern.permute.xlu0 32
    %1146 = vperm.xlu0 %1145, %v196
    %v1147 = vpop.permute.xlu0 %1146
    %1149 = vset.pattern.permute.xlu0 32
    %1150 = vperm.xlu0 %1149, %v197
    %v1151 = vpop.permute.xlu0 %1150
    %v1153 = vadd.f32 %v1133, %v1139
    %v1154 = vadd.f32 %v1134, %v1143
    %v1155 = vadd.f32 %v1135, %v1147
    %v1156 = vadd.f32 %v1136, %v1151
    %vm1157 = vcmp.gt.f32.partialorder %v1153, 0.0
    %vm1158 = vcmp.gt.f32.partialorder %v1154, 0.0
    %vm1159 = vcmp.gt.f32.partialorder %v1155, 0.0
    %vm1160 = vcmp.gt.f32.partialorder %v1156, 0.0
    %v1161 = vmul.f32 %v1153, 1.442695
    %v1162 = vpow.pop %v1161
    %v1163 = vmul.f32 %v1154, 1.442695
    %v1164 = vpow.pop %v1163
    %v1165 = vmul.f32 %v1155, 1.442695
    %v1166 = vpow.pop %v1165
    %v1167 = vmul.f32 %v1156, 1.442695
    %v1168 = vpow.pop %v1167
    %v1169 = vsub.f32 %v1162, 1.0
    %v1170 = vsub.f32 %v1164, 1.0
    %v1171 = vsub.f32 %v1166, 1.0
    %v1172 = vsub.f32 %v1168, 1.0
    %v1173 = vsel %vm1157, %v1153, %v1169
    %v1174 = vsel %vm1158, %v1154, %v1170
    %v1175 = vsel %vm1159, %v1155, %v1171
    %v1176 = vsel %vm1160, %v1156, %v1172
    %v1177 = vld [vmem:[%s3] sm:$0xff]
    %v1178 = vld [vmem:[%s3 + $0x8] sm:$0xff]
    %v1179 = vld [vmem:[%s3 + $0x10] sm:$0xff]
    %v1180 = vld [vmem:[%s3 + $0x18] sm:$0xff]
    %v1181 = vld [vmem:[%s3 + $0x20] sm:$0xff]
    %v1182 = vld [vmem:[%s3 + $0x28] sm:$0xff]
    %v1183 = vld [vmem:[%s3 + $0x30] sm:$0xff]
    %v1184 = vld [vmem:[%s3 + $0x38] sm:$0xff]
    %v1185 = vld [vmem:[%s3 + $0x40] sm:$0xff]
    %v1186 = vld [vmem:[%s3 + $0x48] sm:$0xff]
    %v1187 = vld [vmem:[%s3 + $0x50] sm:$0xff]
    %v1188 = vld [vmem:[%s3 + $0x58] sm:$0xff]
    %v1189 = vld [vmem:[%s3 + $0x60] sm:$0xff]
    %v1190 = vld [vmem:[%s3 + $0x68] sm:$0xff]
    %v1191 = vld [vmem:[%s3 + $0x70] sm:$0xff]
    %v1192 = vld [vmem:[%s3 + $0x78] sm:$0xff]
    %1193 = vmatprep.subr.mxu0 0.0
    %1194 = vmatpush1.msra.mxu0 %v1177
    %1195 = vmatprep.subr.mxu0 0.0
    %1196 = vmatpush1.msra.mxu0 %v1178
    %1197 = vmatprep.subr.mxu0 0.0
    %1198 = vmatpush1.msra.mxu0 %v1179
    %1199 = vmatprep.subr.mxu0 0.0
    %1200 = vmatpush1.msra.mxu0 %v1180
    %1201 = vmatprep.subr.mxu0 0.0
    %1202 = vmatpush1.msra.mxu0 %v1181
    %1203 = vmatprep.subr.mxu0 0.0
    %1204 = vmatpush1.msra.mxu0 %v1182
    %1205 = vmatprep.subr.mxu0 0.0
    %1206 = vmatpush1.msra.mxu0 %v1183
    %1207 = vmatprep.subr.mxu0 0.0
    %1208 = vmatpush1.msra.mxu0 %v1184
    %1209 = vmatprep.subr.mxu0 0.0
    %1210 = vmatpush1.msra.mxu0 %v1185
    %1211 = vmatprep.subr.mxu0 0.0
    %1212 = vmatpush1.msra.mxu0 %v1186
    %1213 = vmatprep.subr.mxu0 0.0
    %1214 = vmatpush1.msra.mxu0 %v1187
    %1215 = vmatprep.subr.mxu0 0.0
    %1216 = vmatpush1.msra.mxu0 %v1188
    %1217 = vmatprep.subr.mxu0 0.0
    %1218 = vmatpush1.msra.mxu0 %v1189
    %1219 = vmatprep.subr.mxu0 0.0
    %1220 = vmatpush1.msra.mxu0 %v1190
    %1221 = vmatprep.subr.mxu0 0.0
    %1222 = vmatpush1.msra.mxu0 %v1191
    %1223 = vmatprep.subr.mxu0 0.0
    %1224 = vmatpush1.msra.mxu0 %v1192
    %1225 = vmatprep.subr.mxu0 0.0
    %1226 = vmatpush1.msra.mxu0 0.0
    %1227 = vmatprep.subr.mxu0 0.0
    %1228 = vmatpush1.msra.mxu0 0.0
    %1229 = vmatprep.subr.mxu0 0.0
    %1230 = vmatpush1.msra.mxu0 0.0
    %1231 = vmatprep.subr.mxu0 0.0
    %1232 = vmatpush1.msra.mxu0 0.0
    %1233 = vmatprep.subr.mxu0 0.0
    %1234 = vmatpush1.msra.mxu0 0.0
    %1235 = vmatprep.subr.mxu0 0.0
    %1236 = vmatpush1.msra.mxu0 0.0
    %1237 = vmatprep.subr.mxu0 0.0
    %1238 = vmatpush1.msra.mxu0 0.0
    %1239 = vmatprep.subr.mxu0 0.0
    %1240 = vmatpush1.msra.mxu0 0.0
    %1241 = vmatprep.subr.mxu0 0.0
    %1242 = vmatpush1.msra.mxu0 0.0
    %1243 = vmatprep.subr.mxu0 0.0
    %1244 = vmatpush1.msra.mxu0 0.0
    %1245 = vmatprep.subr.mxu0 0.0
    %1246 = vmatpush1.msra.mxu0 0.0
    %1247 = vmatprep.subr.mxu0 0.0
    %1248 = vmatpush1.msra.mxu0 0.0
    %1249 = vmatprep.subr.mxu0 0.0
    %1250 = vmatpush1.msra.mxu0 0.0
    %1251 = vmatprep.subr.mxu0 0.0
    %1252 = vmatpush1.msra.mxu0 0.0
    %1253 = vmatprep.subr.mxu0 0.0
    %1254 = vmatpush1.msra.mxu0 0.0
    %1255 = vmatprep.subr.mxu0 0.0
    %1256 = vmatpush1.msra.mxu0 0.0
    %1257 = vmatprep.mubr.f32.mxu0 0.0
    %1258 = vmatmul.mubr.f32.gmra.mrb[0].mxu0 %v1173
    %v1259 = vpop.f32.mrb[0].mxu0
    %v1260 = vadd.f32 0.0, %v1259
    %v1261 = vpop.f32.mrb[0].mxu0
    %1262 = vmatprep.mubr.f32.mxu0 0.0
    %1263 = vmatmul.mubr.f32.gmra.mrb[0].mxu0 %v1174
    %v1264 = vpop.f32.mrb[0].mxu0
    %v1265 = vadd.f32 0.0, %v1264
    %v1266 = vpop.f32.mrb[0].mxu0
    %1267 = vmatprep.mubr.f32.mxu0 0.0
    %1268 = vmatmul.mubr.f32.gmra.mrb[0].mxu0 %v1175
    %v1269 = vpop.f32.mrb[0].mxu0
    %v1270 = vadd.f32 0.0, %v1269
    %v1271 = vpop.f32.mrb[0].mxu0
    %1272 = vmatprep.mubr.f32.mxu0 0.0
    %1273 = vmatmul.mubr.f32.gmra.mrb[0].mxu0 %v1176
    %v1274 = vpop.f32.mrb[0].mxu0
    %v1275 = vadd.f32 0.0, %v1274
    %v1276 = vpop.f32.mrb[0].mxu0
    %1277 = vdwg.mxu0
    %1278 = vset.pattern.permute.xlu0 16
    %1279 = vperm.xlu0 %1278, %v194
    %v1280 = vpop.permute.xlu0 %1279
    %1282 = vset.pattern.permute.xlu0 16
    %1283 = vperm.xlu0 %1282, %v195
    %v1284 = vpop.permute.xlu0 %1283
    %1286 = vset.pattern.permute.xlu0 16
    %1287 = vperm.xlu0 %1286, %v196
    %v1288 = vpop.permute.xlu0 %1287
    %1290 = vset.pattern.permute.xlu0 16
    %1291 = vperm.xlu0 %1290, %v197
    %v1292 = vpop.permute.xlu0 %1291
    %v1294 = vmul.f32 %v1280, %v1260
    %v1295 = vmul.f32 %v1284, %v1265
    %v1296 = vmul.f32 %v1288, %v1270
    %v1297 = vmul.f32 %v1292, %v1275
    %1298 = vset.pattern.permute.xlu0 17
    %1299 = vperm.xlu0 %1298, %v194
    %v1300 = vpop.permute.xlu0 %1299
    %1302 = vset.pattern.permute.xlu0 17
    %1303 = vperm.xlu0 %1302, %v195
    %v1304 = vpop.permute.xlu0 %1303
    %1306 = vset.pattern.permute.xlu0 17
    %1307 = vperm.xlu0 %1306, %v196
    %v1308 = vpop.permute.xlu0 %1307
    %1310 = vset.pattern.permute.xlu0 17
    %1311 = vperm.xlu0 %1310, %v197
    %v1312 = vpop.permute.xlu0 %1311
    %v1314 = vmul.f32 %v1300, %v1260
    %v1315 = vmul.f32 %v1304, %v1265
    %v1316 = vmul.f32 %v1308, %v1270
    %v1317 = vmul.f32 %v1312, %v1275
    %1322 = vrot.lane.b32.xlu0 %v1314, 127
    %v1323 = vpop.permute.xlu0 %1322
    %1324 = vrot.lane.b32.xlu0 %v1315, 127
    %v1325 = vpop.permute.xlu0 %1324
    %1326 = vrot.lane.b32.xlu0 %v1316, 127
    %v1327 = vpop.permute.xlu0 %1326
    %1328 = vrot.lane.b32.xlu0 %v1317, 127
    %v1329 = vpop.permute.xlu0 %1328
    %v1334 = vadd.f32 %v1294, %v1323
    %v1335 = vadd.f32 %v1295, %v1325
    %v1336 = vadd.f32 %v1296, %v1327
    %v1337 = vadd.f32 %v1297, %v1329
    %1338 = vset.pattern.permute.xlu0 18
    %1339 = vperm.xlu0 %1338, %v194
    %v1340 = vpop.permute.xlu0 %1339
    %1342 = vset.pattern.permute.xlu0 18
    %1343 = vperm.xlu0 %1342, %v195
    %v1344 = vpop.permute.xlu0 %1343
    %1346 = vset.pattern.permute.xlu0 18
    %1347 = vperm.xlu0 %1346, %v196
    %v1348 = vpop.permute.xlu0 %1347
    %1350 = vset.pattern.permute.xlu0 18
    %1351 = vperm.xlu0 %1350, %v197
    %v1352 = vpop.permute.xlu0 %1351
    %v1354 = vmul.f32 %v1340, %v1260
    %v1355 = vmul.f32 %v1344, %v1265
    %v1356 = vmul.f32 %v1348, %v1270
    %v1357 = vmul.f32 %v1352, %v1275
    %1362 = vrot.lane.b32.xlu0 %v1354, 126
    %v1363 = vpop.permute.xlu0 %1362
    %1364 = vrot.lane.b32.xlu0 %v1355, 126
    %v1365 = vpop.permute.xlu0 %1364
    %1366 = vrot.lane.b32.xlu0 %v1356, 126
    %v1367 = vpop.permute.xlu0 %1366
    %1368 = vrot.lane.b32.xlu0 %v1357, 126
    %v1369 = vpop.permute.xlu0 %1368
    %v1374 = vadd.f32 %v1334, %v1363
    %v1375 = vadd.f32 %v1335, %v1365
    %v1376 = vadd.f32 %v1336, %v1367
    %v1377 = vadd.f32 %v1337, %v1369
    %1378 = vset.pattern.permute.xlu0 19
    %1379 = vperm.xlu0 %1378, %v194
    %v1380 = vpop.permute.xlu0 %1379
    %1382 = vset.pattern.permute.xlu0 19
    %1383 = vperm.xlu0 %1382, %v195
    %v1384 = vpop.permute.xlu0 %1383
    %1386 = vset.pattern.permute.xlu0 19
    %1387 = vperm.xlu0 %1386, %v196
    %v1388 = vpop.permute.xlu0 %1387
    %1390 = vset.pattern.permute.xlu0 19
    %1391 = vperm.xlu0 %1390, %v197
    %v1392 = vpop.permute.xlu0 %1391
    %v1394 = vmul.f32 %v1380, %v1260
    %v1395 = vmul.f32 %v1384, %v1265
    %v1396 = vmul.f32 %v1388, %v1270
    %v1397 = vmul.f32 %v1392, %v1275
    %1402 = vrot.lane.b32.xlu0 %v1394, 125
    %v1403 = vpop.permute.xlu0 %1402
    %1404 = vrot.lane.b32.xlu0 %v1395, 125
    %v1405 = vpop.permute.xlu0 %1404
    %1406 = vrot.lane.b32.xlu0 %v1396, 125
    %v1407 = vpop.permute.xlu0 %1406
    %1408 = vrot.lane.b32.xlu0 %v1397, 125
    %v1409 = vpop.permute.xlu0 %1408
    %v1414 = vadd.f32 %v1374, %v1403
    %v1415 = vadd.f32 %v1375, %v1405
    %v1416 = vadd.f32 %v1376, %v1407
    %v1417 = vadd.f32 %v1377, %v1409
    %1418 = vset.pattern.permute.xlu0 20
    %1419 = vperm.xlu0 %1418, %v194
    %v1420 = vpop.permute.xlu0 %1419
    %1422 = vset.pattern.permute.xlu0 20
    %1423 = vperm.xlu0 %1422, %v195
    %v1424 = vpop.permute.xlu0 %1423
    %1426 = vset.pattern.permute.xlu0 20
    %1427 = vperm.xlu0 %1426, %v196
    %v1428 = vpop.permute.xlu0 %1427
    %1430 = vset.pattern.permute.xlu0 20
    %1431 = vperm.xlu0 %1430, %v197
    %v1432 = vpop.permute.xlu0 %1431
    %v1434 = vmul.f32 %v1420, %v1260
    %v1435 = vmul.f32 %v1424, %v1265
    %v1436 = vmul.f32 %v1428, %v1270
    %v1437 = vmul.f32 %v1432, %v1275
    %1442 = vrot.lane.b32.xlu0 %v1434, 124
    %v1443 = vpop.permute.xlu0 %1442
    %1444 = vrot.lane.b32.xlu0 %v1435, 124
    %v1445 = vpop.permute.xlu0 %1444
    %1446 = vrot.lane.b32.xlu0 %v1436, 124
    %v1447 = vpop.permute.xlu0 %1446
    %1448 = vrot.lane.b32.xlu0 %v1437, 124
    %v1449 = vpop.permute.xlu0 %1448
    %v1454 = vadd.f32 %v1414, %v1443
    %v1455 = vadd.f32 %v1415, %v1445
    %v1456 = vadd.f32 %v1416, %v1447
    %v1457 = vadd.f32 %v1417, %v1449
    %1458 = vset.pattern.permute.xlu0 21
    %1459 = vperm.xlu0 %1458, %v194
    %v1460 = vpop.permute.xlu0 %1459
    %1462 = vset.pattern.permute.xlu0 21
    %1463 = vperm.xlu0 %1462, %v195
    %v1464 = vpop.permute.xlu0 %1463
    %1466 = vset.pattern.permute.xlu0 21
    %1467 = vperm.xlu0 %1466, %v196
    %v1468 = vpop.permute.xlu0 %1467
    %1470 = vset.pattern.permute.xlu0 21
    %1471 = vperm.xlu0 %1470, %v197
    %v1472 = vpop.permute.xlu0 %1471
    %v1474 = vmul.f32 %v1460, %v1260
    %v1475 = vmul.f32 %v1464, %v1265
    %v1476 = vmul.f32 %v1468, %v1270
    %v1477 = vmul.f32 %v1472, %v1275
    %1482 = vrot.lane.b32.xlu0 %v1474, 123
    %v1483 = vpop.permute.xlu0 %1482
    %1484 = vrot.lane.b32.xlu0 %v1475, 123
    %v1485 = vpop.permute.xlu0 %1484
    %1486 = vrot.lane.b32.xlu0 %v1476, 123
    %v1487 = vpop.permute.xlu0 %1486
    %1488 = vrot.lane.b32.xlu0 %v1477, 123
    %v1489 = vpop.permute.xlu0 %1488
    %v1494 = vadd.f32 %v1454, %v1483
    %v1495 = vadd.f32 %v1455, %v1485
    %v1496 = vadd.f32 %v1456, %v1487
    %v1497 = vadd.f32 %v1457, %v1489
    %1498 = vset.pattern.permute.xlu0 22
    %1499 = vperm.xlu0 %1498, %v194
    %v1500 = vpop.permute.xlu0 %1499
    %1502 = vset.pattern.permute.xlu0 22
    %1503 = vperm.xlu0 %1502, %v195
    %v1504 = vpop.permute.xlu0 %1503
    %1506 = vset.pattern.permute.xlu0 22
    %1507 = vperm.xlu0 %1506, %v196
    %v1508 = vpop.permute.xlu0 %1507
    %1510 = vset.pattern.permute.xlu0 22
    %1511 = vperm.xlu0 %1510, %v197
    %v1512 = vpop.permute.xlu0 %1511
    %v1514 = vmul.f32 %v1500, %v1260
    %v1515 = vmul.f32 %v1504, %v1265
    %v1516 = vmul.f32 %v1508, %v1270
    %v1517 = vmul.f32 %v1512, %v1275
    %1522 = vrot.lane.b32.xlu0 %v1514, 122
    %v1523 = vpop.permute.xlu0 %1522
    %1524 = vrot.lane.b32.xlu0 %v1515, 122
    %v1525 = vpop.permute.xlu0 %1524
    %1526 = vrot.lane.b32.xlu0 %v1516, 122
    %v1527 = vpop.permute.xlu0 %1526
    %1528 = vrot.lane.b32.xlu0 %v1517, 122
    %v1529 = vpop.permute.xlu0 %1528
    %v1534 = vadd.f32 %v1494, %v1523
    %v1535 = vadd.f32 %v1495, %v1525
    %v1536 = vadd.f32 %v1496, %v1527
    %v1537 = vadd.f32 %v1497, %v1529
    %1538 = vset.pattern.permute.xlu0 23
    %1539 = vperm.xlu0 %1538, %v194
    %v1540 = vpop.permute.xlu0 %1539
    %1542 = vset.pattern.permute.xlu0 23
    %1543 = vperm.xlu0 %1542, %v195
    %v1544 = vpop.permute.xlu0 %1543
    %1546 = vset.pattern.permute.xlu0 23
    %1547 = vperm.xlu0 %1546, %v196
    %v1548 = vpop.permute.xlu0 %1547
    %1550 = vset.pattern.permute.xlu0 23
    %1551 = vperm.xlu0 %1550, %v197
    %v1552 = vpop.permute.xlu0 %1551
    %v1554 = vmul.f32 %v1540, %v1260
    %v1555 = vmul.f32 %v1544, %v1265
    %v1556 = vmul.f32 %v1548, %v1270
    %v1557 = vmul.f32 %v1552, %v1275
    %1562 = vrot.lane.b32.xlu0 %v1554, 121
    %v1563 = vpop.permute.xlu0 %1562
    %1564 = vrot.lane.b32.xlu0 %v1555, 121
    %v1565 = vpop.permute.xlu0 %1564
    %1566 = vrot.lane.b32.xlu0 %v1556, 121
    %v1567 = vpop.permute.xlu0 %1566
    %1568 = vrot.lane.b32.xlu0 %v1557, 121
    %v1569 = vpop.permute.xlu0 %1568
    %v1574 = vadd.f32 %v1534, %v1563
    %v1575 = vadd.f32 %v1535, %v1565
    %v1576 = vadd.f32 %v1536, %v1567
    %v1577 = vadd.f32 %v1537, %v1569
    %1578 = vset.pattern.permute.xlu0 24
    %1579 = vperm.xlu0 %1578, %v194
    %v1580 = vpop.permute.xlu0 %1579
    %1582 = vset.pattern.permute.xlu0 24
    %1583 = vperm.xlu0 %1582, %v195
    %v1584 = vpop.permute.xlu0 %1583
    %1586 = vset.pattern.permute.xlu0 24
    %1587 = vperm.xlu0 %1586, %v196
    %v1588 = vpop.permute.xlu0 %1587
    %1590 = vset.pattern.permute.xlu0 24
    %1591 = vperm.xlu0 %1590, %v197
    %v1592 = vpop.permute.xlu0 %1591
    %v1594 = vmul.f32 %v1580, %v1260
    %v1595 = vmul.f32 %v1584, %v1265
    %v1596 = vmul.f32 %v1588, %v1270
    %v1597 = vmul.f32 %v1592, %v1275
    %1602 = vrot.lane.b32.xlu0 %v1594, 120
    %v1603 = vpop.permute.xlu0 %1602
    %1604 = vrot.lane.b32.xlu0 %v1595, 120
    %v1605 = vpop.permute.xlu0 %1604
    %1606 = vrot.lane.b32.xlu0 %v1596, 120
    %v1607 = vpop.permute.xlu0 %1606
    %1608 = vrot.lane.b32.xlu0 %v1597, 120
    %v1609 = vpop.permute.xlu0 %1608
    %v1614 = vadd.f32 %v1574, %v1603
    %v1615 = vadd.f32 %v1575, %v1605
    %v1616 = vadd.f32 %v1576, %v1607
    %v1617 = vadd.f32 %v1577, %v1609
    %1618 = vset.pattern.permute.xlu0 25
    %1619 = vperm.xlu0 %1618, %v194
    %v1620 = vpop.permute.xlu0 %1619
    %1622 = vset.pattern.permute.xlu0 25
    %1623 = vperm.xlu0 %1622, %v195
    %v1624 = vpop.permute.xlu0 %1623
    %1626 = vset.pattern.permute.xlu0 25
    %1627 = vperm.xlu0 %1626, %v196
    %v1628 = vpop.permute.xlu0 %1627
    %1630 = vset.pattern.permute.xlu0 25
    %1631 = vperm.xlu0 %1630, %v197
    %v1632 = vpop.permute.xlu0 %1631
    %v1634 = vmul.f32 %v1620, %v1260
    %v1635 = vmul.f32 %v1624, %v1265
    %v1636 = vmul.f32 %v1628, %v1270
    %v1637 = vmul.f32 %v1632, %v1275
    %1642 = vrot.lane.b32.xlu0 %v1634, 119
    %v1643 = vpop.permute.xlu0 %1642
    %1644 = vrot.lane.b32.xlu0 %v1635, 119
    %v1645 = vpop.permute.xlu0 %1644
    %1646 = vrot.lane.b32.xlu0 %v1636, 119
    %v1647 = vpop.permute.xlu0 %1646
    %1648 = vrot.lane.b32.xlu0 %v1637, 119
    %v1649 = vpop.permute.xlu0 %1648
    %v1654 = vadd.f32 %v1614, %v1643
    %v1655 = vadd.f32 %v1615, %v1645
    %v1656 = vadd.f32 %v1616, %v1647
    %v1657 = vadd.f32 %v1617, %v1649
    %1658 = vset.pattern.permute.xlu0 26
    %1659 = vperm.xlu0 %1658, %v194
    %v1660 = vpop.permute.xlu0 %1659
    %1662 = vset.pattern.permute.xlu0 26
    %1663 = vperm.xlu0 %1662, %v195
    %v1664 = vpop.permute.xlu0 %1663
    %1666 = vset.pattern.permute.xlu0 26
    %1667 = vperm.xlu0 %1666, %v196
    %v1668 = vpop.permute.xlu0 %1667
    %1670 = vset.pattern.permute.xlu0 26
    %1671 = vperm.xlu0 %1670, %v197
    %v1672 = vpop.permute.xlu0 %1671
    %v1674 = vmul.f32 %v1660, %v1260
    %v1675 = vmul.f32 %v1664, %v1265
    %v1676 = vmul.f32 %v1668, %v1270
    %v1677 = vmul.f32 %v1672, %v1275
    %1682 = vrot.lane.b32.xlu0 %v1674, 118
    %v1683 = vpop.permute.xlu0 %1682
    %1684 = vrot.lane.b32.xlu0 %v1675, 118
    %v1685 = vpop.permute.xlu0 %1684
    %1686 = vrot.lane.b32.xlu0 %v1676, 118
    %v1687 = vpop.permute.xlu0 %1686
    %1688 = vrot.lane.b32.xlu0 %v1677, 118
    %v1689 = vpop.permute.xlu0 %1688
    %v1694 = vadd.f32 %v1654, %v1683
    %v1695 = vadd.f32 %v1655, %v1685
    %v1696 = vadd.f32 %v1656, %v1687
    %v1697 = vadd.f32 %v1657, %v1689
    %1698 = vset.pattern.permute.xlu0 27
    %1699 = vperm.xlu0 %1698, %v194
    %v1700 = vpop.permute.xlu0 %1699
    %1702 = vset.pattern.permute.xlu0 27
    %1703 = vperm.xlu0 %1702, %v195
    %v1704 = vpop.permute.xlu0 %1703
    %1706 = vset.pattern.permute.xlu0 27
    %1707 = vperm.xlu0 %1706, %v196
    %v1708 = vpop.permute.xlu0 %1707
    %1710 = vset.pattern.permute.xlu0 27
    %1711 = vperm.xlu0 %1710, %v197
    %v1712 = vpop.permute.xlu0 %1711
    %v1714 = vmul.f32 %v1700, %v1260
    %v1715 = vmul.f32 %v1704, %v1265
    %v1716 = vmul.f32 %v1708, %v1270
    %v1717 = vmul.f32 %v1712, %v1275
    %1722 = vrot.lane.b32.xlu0 %v1714, 117
    %v1723 = vpop.permute.xlu0 %1722
    %1724 = vrot.lane.b32.xlu0 %v1715, 117
    %v1725 = vpop.permute.xlu0 %1724
    %1726 = vrot.lane.b32.xlu0 %v1716, 117
    %v1727 = vpop.permute.xlu0 %1726
    %1728 = vrot.lane.b32.xlu0 %v1717, 117
    %v1729 = vpop.permute.xlu0 %1728
    %v1734 = vadd.f32 %v1694, %v1723
    %v1735 = vadd.f32 %v1695, %v1725
    %v1736 = vadd.f32 %v1696, %v1727
    %v1737 = vadd.f32 %v1697, %v1729
    %1738 = vset.pattern.permute.xlu0 28
    %1739 = vperm.xlu0 %1738, %v194
    %v1740 = vpop.permute.xlu0 %1739
    %1742 = vset.pattern.permute.xlu0 28
    %1743 = vperm.xlu0 %1742, %v195
    %v1744 = vpop.permute.xlu0 %1743
    %1746 = vset.pattern.permute.xlu0 28
    %1747 = vperm.xlu0 %1746, %v196
    %v1748 = vpop.permute.xlu0 %1747
    %1750 = vset.pattern.permute.xlu0 28
    %1751 = vperm.xlu0 %1750, %v197
    %v1752 = vpop.permute.xlu0 %1751
    %v1754 = vmul.f32 %v1740, %v1260
    %v1755 = vmul.f32 %v1744, %v1265
    %v1756 = vmul.f32 %v1748, %v1270
    %v1757 = vmul.f32 %v1752, %v1275
    %1762 = vrot.lane.b32.xlu0 %v1754, 116
    %v1763 = vpop.permute.xlu0 %1762
    %1764 = vrot.lane.b32.xlu0 %v1755, 116
    %v1765 = vpop.permute.xlu0 %1764
    %1766 = vrot.lane.b32.xlu0 %v1756, 116
    %v1767 = vpop.permute.xlu0 %1766
    %1768 = vrot.lane.b32.xlu0 %v1757, 116
    %v1769 = vpop.permute.xlu0 %1768
    %v1774 = vadd.f32 %v1734, %v1763
    %v1775 = vadd.f32 %v1735, %v1765
    %v1776 = vadd.f32 %v1736, %v1767
    %v1777 = vadd.f32 %v1737, %v1769
    %1778 = vset.pattern.permute.xlu0 29
    %1779 = vperm.xlu0 %1778, %v194
    %v1780 = vpop.permute.xlu0 %1779
    %1782 = vset.pattern.permute.xlu0 29
    %1783 = vperm.xlu0 %1782, %v195
    %v1784 = vpop.permute.xlu0 %1783
    %1786 = vset.pattern.permute.xlu0 29
    %1787 = vperm.xlu0 %1786, %v196
    %v1788 = vpop.permute.xlu0 %1787
    %1790 = vset.pattern.permute.xlu0 29
    %1791 = vperm.xlu0 %1790, %v197
    %v1792 = vpop.permute.xlu0 %1791
    %v1794 = vmul.f32 %v1780, %v1260
    %v1795 = vmul.f32 %v1784, %v1265
    %v1796 = vmul.f32 %v1788, %v1270
    %v1797 = vmul.f32 %v1792, %v1275
    %1802 = vrot.lane.b32.xlu0 %v1794, 115
    %v1803 = vpop.permute.xlu0 %1802
    %1804 = vrot.lane.b32.xlu0 %v1795, 115
    %v1805 = vpop.permute.xlu0 %1804
    %1806 = vrot.lane.b32.xlu0 %v1796, 115
    %v1807 = vpop.permute.xlu0 %1806
    %1808 = vrot.lane.b32.xlu0 %v1797, 115
    %v1809 = vpop.permute.xlu0 %1808
    %v1814 = vadd.f32 %v1774, %v1803
    %v1815 = vadd.f32 %v1775, %v1805
    %v1816 = vadd.f32 %v1776, %v1807
    %v1817 = vadd.f32 %v1777, %v1809
    %1818 = vset.pattern.permute.xlu0 30
    %1819 = vperm.xlu0 %1818, %v194
    %v1820 = vpop.permute.xlu0 %1819
    %1822 = vset.pattern.permute.xlu0 30
    %1823 = vperm.xlu0 %1822, %v195
    %v1824 = vpop.permute.xlu0 %1823
    %1826 = vset.pattern.permute.xlu0 30
    %1827 = vperm.xlu0 %1826, %v196
    %v1828 = vpop.permute.xlu0 %1827
    %1830 = vset.pattern.permute.xlu0 30
    %1831 = vperm.xlu0 %1830, %v197
    %v1832 = vpop.permute.xlu0 %1831
    %v1834 = vmul.f32 %v1820, %v1260
    %v1835 = vmul.f32 %v1824, %v1265
    %v1836 = vmul.f32 %v1828, %v1270
    %v1837 = vmul.f32 %v1832, %v1275
    %1842 = vrot.lane.b32.xlu0 %v1834, 114
    %v1843 = vpop.permute.xlu0 %1842
    %1844 = vrot.lane.b32.xlu0 %v1835, 114
    %v1845 = vpop.permute.xlu0 %1844
    %1846 = vrot.lane.b32.xlu0 %v1836, 114
    %v1847 = vpop.permute.xlu0 %1846
    %1848 = vrot.lane.b32.xlu0 %v1837, 114
    %v1849 = vpop.permute.xlu0 %1848
    %v1854 = vadd.f32 %v1814, %v1843
    %v1855 = vadd.f32 %v1815, %v1845
    %v1856 = vadd.f32 %v1816, %v1847
    %v1857 = vadd.f32 %v1817, %v1849
    %1858 = vset.pattern.permute.xlu0 31
    %1859 = vperm.xlu0 %1858, %v194
    %v1860 = vpop.permute.xlu0 %1859
    %1862 = vset.pattern.permute.xlu0 31
    %1863 = vperm.xlu0 %1862, %v195
    %v1864 = vpop.permute.xlu0 %1863
    %1866 = vset.pattern.permute.xlu0 31
    %1867 = vperm.xlu0 %1866, %v196
    %v1868 = vpop.permute.xlu0 %1867
    %1870 = vset.pattern.permute.xlu0 31
    %1871 = vperm.xlu0 %1870, %v197
    %v1872 = vpop.permute.xlu0 %1871
    %v1874 = vmul.f32 %v1860, %v1260
    %v1875 = vmul.f32 %v1864, %v1265
    %v1876 = vmul.f32 %v1868, %v1270
    %v1877 = vmul.f32 %v1872, %v1275
    %1882 = vrot.lane.b32.xlu0 %v1874, 113
    %v1883 = vpop.permute.xlu0 %1882
    %1884 = vrot.lane.b32.xlu0 %v1875, 113
    %v1885 = vpop.permute.xlu0 %1884
    %1886 = vrot.lane.b32.xlu0 %v1876, 113
    %v1887 = vpop.permute.xlu0 %1886
    %1888 = vrot.lane.b32.xlu0 %v1877, 113
    %v1889 = vpop.permute.xlu0 %1888
    %v1894 = vadd.f32 %v1854, %v1883
    %v1895 = vadd.f32 %v1855, %v1885
    %v1896 = vadd.f32 %v1856, %v1887
    %v1897 = vadd.f32 %v1857, %v1889
    %v1898 = vld [vmem:[#allocation8] sm:$0xff]
    %v1899 = vld [vmem:[#allocation8 + $0x8] sm:$0xff]
    %v1900 = vld [vmem:[#allocation8 + $0x10] sm:$0xff]
    %v1901 = vld [vmem:[#allocation8 + $0x18] sm:$0xff]
    %1902 = vset.pattern.permute.xlu0 33
    %1903 = vperm.xlu0 %1902, %v194
    %v1904 = vpop.permute.xlu0 %1903
    %1906 = vset.pattern.permute.xlu0 33
    %1907 = vperm.xlu0 %1906, %v195
    %v1908 = vpop.permute.xlu0 %1907
    %1910 = vset.pattern.permute.xlu0 33
    %1911 = vperm.xlu0 %1910, %v196
    %v1912 = vpop.permute.xlu0 %1911
    %1914 = vset.pattern.permute.xlu0 33
    %1915 = vperm.xlu0 %1914, %v197
    %v1916 = vpop.permute.xlu0 %1915
    %vm1918 = vcmask 261120
    %v1920 = vsel %vm1918, %v1898, 0
    %v1923 = vsel %vm1918, %v1899, 0
    %v1926 = vsel %vm1918, %v1900, 0
    %v1929 = vsel %vm1918, %v1901, 0
    %1931 = vmatprep.subr.mxu0 0.0
    %1932 = vmatpush1.msra.mxu0 %v1894
    %1933 = vmatprep.subr.mxu0 0.0
    %1934 = vmatpush1.msra.mxu0 %v1895
    %1935 = vmatprep.subr.mxu0 0.0
    %1936 = vmatpush1.msra.mxu0 %v1896
    %1937 = vmatprep.subr.mxu0 0.0
    %1938 = vmatpush1.msra.mxu0 %v1897
    %1939 = vmatprep.subr.mxu0 0.0
    %1940 = vmatpush1.msra.mxu0 0.0
    %1941 = vmatprep.subr.mxu0 0.0
    %1942 = vmatpush1.msra.mxu0 0.0
    %1943 = vmatprep.subr.mxu0 0.0
    %1944 = vmatpush1.msra.mxu0 0.0
    %1945 = vmatprep.subr.mxu0 0.0
    %1946 = vmatpush1.msra.mxu0 0.0
    %1947 = vmatprep.subr.mxu0 0.0
    %1948 = vmatpush1.msra.mxu0 0.0
    %1949 = vmatprep.subr.mxu0 0.0
    %1950 = vmatpush1.msra.mxu0 0.0
    %1951 = vmatprep.subr.mxu0 0.0
    %1952 = vmatpush1.msra.mxu0 0.0
    %1953 = vmatprep.subr.mxu0 0.0
    %1954 = vmatpush1.msra.mxu0 0.0
    %1955 = vmatprep.subr.mxu0 0.0
    %1956 = vmatpush1.msra.mxu0 0.0
    %1957 = vmatprep.subr.mxu0 0.0
    %1958 = vmatpush1.msra.mxu0 0.0
    %1959 = vmatprep.subr.mxu0 0.0
    %1960 = vmatpush1.msra.mxu0 0.0
    %1961 = vmatprep.subr.mxu0 0.0
    %1962 = vmatpush1.msra.mxu0 0.0
    %1963 = vmatprep.subr.mxu0 0.0
    %1964 = vmatpush1.msra.mxu0 0.0
    %1965 = vmatprep.subr.mxu0 0.0
    %1966 = vmatpush1.msra.mxu0 0.0
    %1967 = vmatprep.subr.mxu0 0.0
    %1968 = vmatpush1.msra.mxu0 0.0
    %1969 = vmatprep.subr.mxu0 0.0
    %1970 = vmatpush1.msra.mxu0 0.0
    %1971 = vmatprep.subr.mxu0 0.0
    %1972 = vmatpush1.msra.mxu0 0.0
    %1973 = vmatprep.subr.mxu0 0.0
    %1974 = vmatpush1.msra.mxu0 0.0
    %1975 = vmatprep.subr.mxu0 0.0
    %1976 = vmatpush1.msra.mxu0 0.0
    %1977 = vmatprep.subr.mxu0 0.0
    %1978 = vmatpush1.msra.mxu0 0.0
    %1979 = vmatprep.subr.mxu0 0.0
    %1980 = vmatpush1.msra.mxu0 0.0
    %1981 = vmatprep.subr.mxu0 0.0
    %1982 = vmatpush1.msra.mxu0 0.0
    %1983 = vmatprep.subr.mxu0 0.0
    %1984 = vmatpush1.msra.mxu0 0.0
    %1985 = vmatprep.subr.mxu0 0.0
    %1986 = vmatpush1.msra.mxu0 0.0
    %1987 = vmatprep.subr.mxu0 0.0
    %1988 = vmatpush1.msra.mxu0 0.0
    %1989 = vmatprep.subr.mxu0 0.0
    %1990 = vmatpush1.msra.mxu0 0.0
    %1991 = vmatprep.subr.mxu0 0.0
    %1992 = vmatpush1.msra.mxu0 0.0
    %1993 = vmatprep.subr.mxu0 0.0
    %1994 = vmatpush1.msra.mxu0 0.0
    %1995 = vmatprep.mubr.f32.mxu0 0.0
    %1996 = vmatmul.mubr.f32.gmra.mrb[0].mxu0 %v1920
    %v1997 = vpop.f32.mrb[0].mxu0
    %v1998 = vadd.f32 %v1904, %v1997
    %v1999 = vpop.f32.mrb[0].mxu0
    %2000 = vmatprep.mubr.f32.mxu0 0.0
    %2001 = vmatmul.mubr.f32.gmra.mrb[0].mxu0 %v1923
    %v2002 = vpop.f32.mrb[0].mxu0
    %v2003 = vadd.f32 %v1908, %v2002
    %v2004 = vpop.f32.mrb[0].mxu0
    %2005 = vmatprep.mubr.f32.mxu0 0.0
    %2006 = vmatmul.mubr.f32.gmra.mrb[0].mxu0 %v1926
    %v2007 = vpop.f32.mrb[0].mxu0
    %v2008 = vadd.f32 %v1912, %v2007
    %v2009 = vpop.f32.mrb[0].mxu0
    %2010 = vmatprep.mubr.f32.mxu0 0.0
    %2011 = vmatmul.mubr.f32.gmra.mrb[0].mxu0 %v1929
    %v2012 = vpop.f32.mrb[0].mxu0
    %v2013 = vadd.f32 %v1916, %v2012
    %v2014 = vpop.f32.mrb[0].mxu0
    %2015 = vdwg.mxu0
    %vm2016 = vcmp.gt.f32.partialorder %v1998, 0.0
    %vm2017 = vcmp.gt.f32.partialorder %v2003, 0.0
    %vm2018 = vcmp.gt.f32.partialorder %v2008, 0.0
    %vm2019 = vcmp.gt.f32.partialorder %v2013, 0.0
    %v2020 = vmul.f32 %v1998, 1.442695
    %v2021 = vpow.pop %v2020
    %v2022 = vmul.f32 %v2003, 1.442695
    %v2023 = vpow.pop %v2022
    %v2024 = vmul.f32 %v2008, 1.442695
    %v2025 = vpow.pop %v2024
    %v2026 = vmul.f32 %v2013, 1.442695
    %v2027 = vpow.pop %v2026
    %v2028 = vsub.f32 %v2021, 1.0
    %v2029 = vsub.f32 %v2023, 1.0
    %v2030 = vsub.f32 %v2025, 1.0
    %v2031 = vsub.f32 %v2027, 1.0
    %v2032 = vsel %vm2016, %v1998, %v2028
    %v2033 = vsel %vm2017, %v2003, %v2029
    %v2034 = vsel %vm2018, %v2008, %v2030
    %v2035 = vsel %vm2019, %v2013, %v2031
    %v2036 = vld [vmem:[%s5] sm:$0xff]
    %v2037 = vld [vmem:[%s5 + $0x8] sm:$0xff]
    %v2038 = vld [vmem:[%s5 + $0x10] sm:$0xff]
    %v2039 = vld [vmem:[%s5 + $0x18] sm:$0xff]
    %v2040 = vld [vmem:[%s5 + $0x20] sm:$0xff]
    %v2041 = vld [vmem:[%s5 + $0x28] sm:$0xff]
    %v2042 = vld [vmem:[%s5 + $0x30] sm:$0xff]
    %v2043 = vld [vmem:[%s5 + $0x38] sm:$0xff]
    %v2044 = vld [vmem:[%s5 + $0x40] sm:$0xff]
    %v2045 = vld [vmem:[%s5 + $0x48] sm:$0xff]
    %v2046 = vld [vmem:[%s5 + $0x50] sm:$0xff]
    %v2047 = vld [vmem:[%s5 + $0x58] sm:$0xff]
    %v2048 = vmul.f32 %v2032, %v2036
    %v2049 = vmul.f32 %v2033, %v2037
    %v2050 = vmul.f32 %v2034, %v2038
    %v2051 = vmul.f32 %v2035, %v2039
    %v2052 = vsel %vm1918, %v2048, 0.0
    %2053 = vadd.xlane.f32.xlu0 %v2052
    %v2054 = vpop.xlane.xlu0 %2053
    %v2055 = vsel %vm1918, %v2049, 0.0
    %2056 = vadd.xlane.f32.xlu0 %v2055
    %v2057 = vpop.xlane.xlu0 %2056
    %v2058 = vsel %vm1918, %v2050, 0.0
    %2059 = vadd.xlane.f32.xlu0 %v2058
    %v2060 = vpop.xlane.xlu0 %2059
    %v2061 = vsel %vm1918, %v2051, 0.0
    %2062 = vadd.xlane.f32.xlu0 %v2061
    %v2063 = vpop.xlane.xlu0 %2062
    %v2064 = vmul.f32 %v2032, %v2040
    %v2065 = vmul.f32 %v2033, %v2041
    %v2066 = vmul.f32 %v2034, %v2042
    %v2067 = vmul.f32 %v2035, %v2043
    %v2068 = vsel %vm1918, %v2064, 0.0
    %2069 = vadd.xlane.f32.xlu0 %v2068
    %v2070 = vpop.xlane.xlu0 %2069
    %v2071 = vsel %vm1918, %v2065, 0.0
    %2072 = vadd.xlane.f32.xlu0 %v2071
    %v2073 = vpop.xlane.xlu0 %2072
    %v2074 = vsel %vm1918, %v2066, 0.0
    %2075 = vadd.xlane.f32.xlu0 %v2074
    %v2076 = vpop.xlane.xlu0 %2075
    %v2077 = vsel %vm1918, %v2067, 0.0
    %2078 = vadd.xlane.f32.xlu0 %v2077
    %v2079 = vpop.xlane.xlu0 %2078
    %v2080 = vmul.f32 %v2032, %v2044
    %v2081 = vmul.f32 %v2033, %v2045
    %v2082 = vmul.f32 %v2034, %v2046
    %v2083 = vmul.f32 %v2035, %v2047
    %v2084 = vsel %vm1918, %v2080, 0.0
    %2085 = vadd.xlane.f32.xlu0 %v2084
    %v2086 = vpop.xlane.xlu0 %2085
    %v2087 = vsel %vm1918, %v2081, 0.0
    %2088 = vadd.xlane.f32.xlu0 %v2087
    %v2089 = vpop.xlane.xlu0 %2088
    %v2090 = vsel %vm1918, %v2082, 0.0
    %2091 = vadd.xlane.f32.xlu0 %v2090
    %v2092 = vpop.xlane.xlu0 %2091
    %v2093 = vsel %vm1918, %v2083, 0.0
    %2094 = vadd.xlane.f32.xlu0 %v2093
    %v2095 = vpop.xlane.xlu0 %2094
    %v2096 = vlaneseq
    %v2097 = vand.u32 %v2096, 127
    %vm2098 = vcmp.eq.s32.totalorder %v2097, 0
    %v2099 = vsel %vm2098, 1, 0
    %v2100 = vcvt.s32.f32 %v2099
    %v2101 = vmul.f32 %v2054, %v2100
    %v2102 = vmul.f32 %v2057, %v2100
    %v2103 = vmul.f32 %v2060, %v2100
    %v2104 = vmul.f32 %v2063, %v2100
    %vm2105 = vcmp.eq.s32.totalorder %v2097, 1
    %v2106 = vsel %vm2105, 1, 0
    %v2107 = vcvt.s32.f32 %v2106
    %v2108 = vmul.f32 %v2070, %v2107
    %v2109 = vmul.f32 %v2073, %v2107
    %v2110 = vmul.f32 %v2076, %v2107
    %v2111 = vmul.f32 %v2079, %v2107
    %v2112 = vadd.f32 %v2101, %v2108
    %v2113 = vadd.f32 %v2102, %v2109
    %v2114 = vadd.f32 %v2103, %v2110
    %v2115 = vadd.f32 %v2104, %v2111
    %vm2116 = vcmp.eq.s32.totalorder %v2097, 2
    %v2117 = vsel %vm2116, 1, 0
    %v2118 = vcvt.s32.f32 %v2117
    %v2119 = vmul.f32 %v2086, %v2118
    %v2120 = vmul.f32 %v2089, %v2118
    %v2121 = vmul.f32 %v2092, %v2118
    %v2122 = vmul.f32 %v2095, %v2118
    %v2123 = vadd.f32 %v2112, %v2119
    %v2124 = vadd.f32 %v2113, %v2120
    %v2125 = vadd.f32 %v2114, %v2121
    %v2126 = vadd.f32 %v2115, %v2122
    %v2127 = vld [vmem:[%s6] sm:$0x3]
    %v2128 = vld [vmem:[%s3 + $0x80] sm:$0x1]
    %v2129 = vlaneseq
    %v2130 = vshrl.u32 %v2129, 7
    %v2131 = vsub.s32 0, %v2130
    %v2132 = vrot.slane %v2128, %v2131
    %v2134 = vsel %vm1918, %v2127, 0
    %2136 = vmatprep.subr.mxu0 0.0
    %v2137 = vand.u32 %v2123, 4294901760
    %2138 = vmatpush1.msra.mxu0 %v2137
    %2139 = vmatprep.subr.mxu0 0.0
    %v2140 = vand.u32 %v2124, 4294901760
    %2141 = vmatpush1.msra.mxu0 %v2140
    %2142 = vmatprep.subr.mxu0 0.0
    %v2143 = vand.u32 %v2125, 4294901760
    %2144 = vmatpush1.msra.mxu0 %v2143
    %2145 = vmatprep.subr.mxu0 0.0
    %v2146 = vand.u32 %v2126, 4294901760
    %2147 = vmatpush1.msra.mxu0 %v2146
    %2148 = vmatprep.subr.mxu0 0.0
    %2149 = vmatpush1.msra.mxu0 0.0
    %2150 = vmatprep.subr.mxu0 0.0
    %2151 = vmatpush1.msra.mxu0 0.0
    %2152 = vmatprep.subr.mxu0 0.0
    %2153 = vmatpush1.msra.mxu0 0.0
    %2154 = vmatprep.subr.mxu0 0.0
    %2155 = vmatpush1.msra.mxu0 0.0
    %2156 = vmatprep.subr.mxu0 0.0
    %2157 = vmatpush1.msra.mxu0 0.0
    %2158 = vmatprep.subr.mxu0 0.0
    %2159 = vmatpush1.msra.mxu0 0.0
    %2160 = vmatprep.subr.mxu0 0.0
    %2161 = vmatpush1.msra.mxu0 0.0
    %2162 = vmatprep.subr.mxu0 0.0
    %2163 = vmatpush1.msra.mxu0 0.0
    %2164 = vmatprep.subr.mxu0 0.0
    %2165 = vmatpush1.msra.mxu0 0.0
    %2166 = vmatprep.subr.mxu0 0.0
    %2167 = vmatpush1.msra.mxu0 0.0
    %2168 = vmatprep.subr.mxu0 0.0
    %2169 = vmatpush1.msra.mxu0 0.0
    %2170 = vmatprep.subr.mxu0 0.0
    %2171 = vmatpush1.msra.mxu0 0.0
    %2172 = vmatprep.subr.mxu0 0.0
    %2173 = vmatpush1.msra.mxu0 0.0
    %2174 = vmatprep.subr.mxu0 0.0
    %2175 = vmatpush1.msra.mxu0 0.0
    %2176 = vmatprep.subr.mxu0 0.0
    %2177 = vmatpush1.msra.mxu0 0.0
    %2178 = vmatprep.subr.mxu0 0.0
    %2179 = vmatpush1.msra.mxu0 0.0
    %2180 = vmatprep.subr.mxu0 0.0
    %2181 = vmatpush1.msra.mxu0 0.0
    %2182 = vmatprep.subr.mxu0 0.0
    %2183 = vmatpush1.msra.mxu0 0.0
    %2184 = vmatprep.subr.mxu0 0.0
    %2185 = vmatpush1.msra.mxu0 0.0
    %2186 = vmatprep.subr.mxu0 0.0
    %2187 = vmatpush1.msra.mxu0 0.0
    %2188 = vmatprep.subr.mxu0 0.0
    %2189 = vmatpush1.msra.mxu0 0.0
    %2190 = vmatprep.subr.mxu0 0.0
    %2191 = vmatpush1.msra.mxu0 0.0
    %2192 = vmatprep.subr.mxu0 0.0
    %2193 = vmatpush1.msra.mxu0 0.0
    %2194 = vmatprep.subr.mxu0 0.0
    %2195 = vmatpush1.msra.mxu0 0.0
    %2196 = vmatprep.subr.mxu0 0.0
    %2197 = vmatpush1.msra.mxu0 0.0
    %2198 = vmatprep.subr.mxu0 0.0
    %2199 = vmatpush1.msra.mxu0 0.0
    %2200 = vmatprep.subr.mxu0 0.0
    %2201 = vmatpush1.msra.mxu0 0.0
    %2202 = vmatprep.subr.mxu0 0.0
    %2203 = vmatpush1.msra.mxu0 0.0
    %2204 = vmatprep.mubr.f32.mxu0 0.0
    %v2205 = vand.u32 %v2134, 4294901760
    %v2206 = vsub.f32 %v2134, %v2205
    %v2207 = vand.u32 %v2206, 4294901760
    %v2208 = vsub.f32 %v2206, %v2207
    %v2209 = vand.u32 %v2208, 4294901760
    %2210 = vmatmul.mubr.f32.gmra.mrb[0].mxu0 %v2209
    %v2211 = vpop.f32.mrb[0].mxu0
    %v2212 = vadd.f32 %v2132, %v2211
    %v2213 = vpop.f32.mrb[0].mxu0
    %2214 = vdwg.mxu0
    %2215 = vmatprep.subr.mxu0 0.0
    %v2216 = vand.u32 %v2123, 4294901760
    %v2217 = vsub.f32 %v2123, %v2216
    %v2218 = vand.u32 %v2217, 4294901760
    %v2219 = vsub.f32 %v2217, %v2218
    %v2220 = vand.u32 %v2219, 4294901760
    %2221 = vmatpush1.msra.mxu0 %v2220
    %2222 = vmatprep.subr.mxu0 0.0
    %v2223 = vand.u32 %v2124, 4294901760
    %v2224 = vsub.f32 %v2124, %v2223
    %v2225 = vand.u32 %v2224, 4294901760
    %v2226 = vsub.f32 %v2224, %v2225
    %v2227 = vand.u32 %v2226, 4294901760
    %2228 = vmatpush1.msra.mxu0 %v2227
    %2229 = vmatprep.subr.mxu0 0.0
    %v2230 = vand.u32 %v2125, 4294901760
    %v2231 = vsub.f32 %v2125, %v2230
    %v2232 = vand.u32 %v2231, 4294901760
    %v2233 = vsub.f32 %v2231, %v2232
    %v2234 = vand.u32 %v2233, 4294901760
    %2235 = vmatpush1.msra.mxu0 %v2234
    %2236 = vmatprep.subr.mxu0 0.0
    %v2237 = vand.u32 %v2126, 4294901760
    %v2238 = vsub.f32 %v2126, %v2237
    %v2239 = vand.u32 %v2238, 4294901760
    %v2240 = vsub.f32 %v2238, %v2239
    %v2241 = vand.u32 %v2240, 4294901760
    %2242 = vmatpush1.msra.mxu0 %v2241
    %2243 = vmatprep.subr.mxu0 0.0
    %2244 = vmatpush1.msra.mxu0 0.0
    %2245 = vmatprep.subr.mxu0 0.0
    %2246 = vmatpush1.msra.mxu0 0.0
    %2247 = vmatprep.subr.mxu0 0.0
    %2248 = vmatpush1.msra.mxu0 0.0
    %2249 = vmatprep.subr.mxu0 0.0
    %2250 = vmatpush1.msra.mxu0 0.0
    %2251 = vmatprep.subr.mxu0 0.0
    %2252 = vmatpush1.msra.mxu0 0.0
    %2253 = vmatprep.subr.mxu0 0.0
    %2254 = vmatpush1.msra.mxu0 0.0
    %2255 = vmatprep.subr.mxu0 0.0
    %2256 = vmatpush1.msra.mxu0 0.0
    %2257 = vmatprep.subr.mxu0 0.0
    %2258 = vmatpush1.msra.mxu0 0.0
    %2259 = vmatprep.subr.mxu0 0.0
    %2260 = vmatpush1.msra.mxu0 0.0
    %2261 = vmatprep.subr.mxu0 0.0
    %2262 = vmatpush1.msra.mxu0 0.0
    %2263 = vmatprep.subr.mxu0 0.0
    %2264 = vmatpush1.msra.mxu0 0.0
    %2265 = vmatprep.subr.mxu0 0.0
    %2266 = vmatpush1.msra.mxu0 0.0
    %2267 = vmatprep.subr.mxu0 0.0
    %2268 = vmatpush1.msra.mxu0 0.0
    %2269 = vmatprep.subr.mxu0 0.0
    %2270 = vmatpush1.msra.mxu0 0.0
    %2271 = vmatprep.subr.mxu0 0.0
    %2272 = vmatpush1.msra.mxu0 0.0
    %2273 = vmatprep.subr.mxu0 0.0
    %2274 = vmatpush1.msra.mxu0 0.0
    %2275 = vmatprep.subr.mxu0 0.0
    %2276 = vmatpush1.msra.mxu0 0.0
    %2277 = vmatprep.subr.mxu0 0.0
    %2278 = vmatpush1.msra.mxu0 0.0
    %2279 = vmatprep.subr.mxu0 0.0
    %2280 = vmatpush1.msra.mxu0 0.0
    %2281 = vmatprep.subr.mxu0 0.0
    %2282 = vmatpush1.msra.mxu0 0.0
    %2283 = vmatprep.subr.mxu0 0.0
    %2284 = vmatpush1.msra.mxu0 0.0
    %2285 = vmatprep.subr.mxu0 0.0
    %2286 = vmatpush1.msra.mxu0 0.0
    %2287 = vmatprep.subr.mxu0 0.0
    %2288 = vmatpush1.msra.mxu0 0.0
    %2289 = vmatprep.subr.mxu0 0.0
    %2290 = vmatpush1.msra.mxu0 0.0
    %2291 = vmatprep.subr.mxu0 0.0
    %2292 = vmatpush1.msra.mxu0 0.0
    %2293 = vmatprep.subr.mxu0 0.0
    %2294 = vmatpush1.msra.mxu0 0.0
    %2295 = vmatprep.subr.mxu0 0.0
    %2296 = vmatpush1.msra.mxu0 0.0
    %2297 = vmatprep.subr.mxu0 0.0
    %2298 = vmatpush1.msra.mxu0 0.0
    %2299 = vmatprep.mubr.f32.mxu0 0.0
    %v2300 = vand.u32 %v2134, 4294901760
    %2301 = vmatmul.mubr.f32.gmra.mrb[0].mxu0 %v2300
    %v2302 = vpop.f32.mrb[0].mxu0
    %v2303 = vadd.f32 %v2212, %v2302
    %v2304 = vpop.f32.mrb[0].mxu0
    %2305 = vdwg.mxu0
    %2306 = vmatprep.subr.mxu0 0.0
    %v2307 = vand.u32 %v2123, 4294901760
    %v2308 = vsub.f32 %v2123, %v2307
    %2309 = vmatpush1.msra.mxu0 %v2308
    %2310 = vmatprep.subr.mxu0 0.0
    %v2311 = vand.u32 %v2124, 4294901760
    %v2312 = vsub.f32 %v2124, %v2311
    %2313 = vmatpush1.msra.mxu0 %v2312
    %2314 = vmatprep.subr.mxu0 0.0
    %v2315 = vand.u32 %v2125, 4294901760
    %v2316 = vsub.f32 %v2125, %v2315
    %2317 = vmatpush1.msra.mxu0 %v2316
    %2318 = vmatprep.subr.mxu0 0.0
    %v2319 = vand.u32 %v2126, 4294901760
    %v2320 = vsub.f32 %v2126, %v2319
    %2321 = vmatpush1.msra.mxu0 %v2320
    %2322 = vmatprep.subr.mxu0 0.0
    %2323 = vmatpush1.msra.mxu0 0.0
    %2324 = vmatprep.subr.mxu0 0.0
    %2325 = vmatpush1.msra.mxu0 0.0
    %2326 = vmatprep.subr.mxu0 0.0
    %2327 = vmatpush1.msra.mxu0 0.0
    %2328 = vmatprep.subr.mxu0 0.0
    %2329 = vmatpush1.msra.mxu0 0.0
    %2330 = vmatprep.subr.mxu0 0.0
    %2331 = vmatpush1.msra.mxu0 0.0
    %2332 = vmatprep.subr.mxu0 0.0
    %2333 = vmatpush1.msra.mxu0 0.0
    %2334 = vmatprep.subr.mxu0 0.0
    %2335 = vmatpush1.msra.mxu0 0.0
    %2336 = vmatprep.subr.mxu0 0.0
    %2337 = vmatpush1.msra.mxu0 0.0
    %2338 = vmatprep.subr.mxu0 0.0
    %2339 = vmatpush1.msra.mxu0 0.0
    %2340 = vmatprep.subr.mxu0 0.0
    %2341 = vmatpush1.msra.mxu0 0.0
    %2342 = vmatprep.subr.mxu0 0.0
    %2343 = vmatpush1.msra.mxu0 0.0
    %2344 = vmatprep.subr.mxu0 0.0
    %2345 = vmatpush1.msra.mxu0 0.0
    %2346 = vmatprep.subr.mxu0 0.0
    %2347 = vmatpush1.msra.mxu0 0.0
    %2348 = vmatprep.subr.mxu0 0.0
    %2349 = vmatpush1.msra.mxu0 0.0
    %2350 = vmatprep.subr.mxu0 0.0
    %2351 = vmatpush1.msra.mxu0 0.0
    %2352 = vmatprep.subr.mxu0 0.0
    %2353 = vmatpush1.msra.mxu0 0.0
    %2354 = vmatprep.subr.mxu0 0.0
    %2355 = vmatpush1.msra.mxu0 0.0
    %2356 = vmatprep.subr.mxu0 0.0
    %2357 = vmatpush1.msra.mxu0 0.0
    %2358 = vmatprep.subr.mxu0 0.0
    %2359 = vmatpush1.msra.mxu0 0.0
    %2360 = vmatprep.subr.mxu0 0.0
    %2361 = vmatpush1.msra.mxu0 0.0
    %2362 = vmatprep.subr.mxu0 0.0
    %2363 = vmatpush1.msra.mxu0 0.0
    %2364 = vmatprep.subr.mxu0 0.0
    %2365 = vmatpush1.msra.mxu0 0.0
    %2366 = vmatprep.subr.mxu0 0.0
    %2367 = vmatpush1.msra.mxu0 0.0
    %2368 = vmatprep.subr.mxu0 0.0
    %2369 = vmatpush1.msra.mxu0 0.0
    %2370 = vmatprep.subr.mxu0 0.0
    %2371 = vmatpush1.msra.mxu0 0.0
    %2372 = vmatprep.subr.mxu0 0.0
    %2373 = vmatpush1.msra.mxu0 0.0
    %2374 = vmatprep.subr.mxu0 0.0
    %2375 = vmatpush1.msra.mxu0 0.0
    %2376 = vmatprep.subr.mxu0 0.0
    %2377 = vmatpush1.msra.mxu0 0.0
    %2378 = vmatprep.mubr.f32.mxu0 0.0
    %v2379 = vand.u32 %v2134, 4294901760
    %v2380 = vsub.f32 %v2134, %v2379
    %2381 = vmatmul.mubr.f32.gmra.mrb[0].mxu0 %v2380
    %v2382 = vpop.f32.mrb[0].mxu0
    %v2383 = vadd.f32 %v2303, %v2382
    %v2384 = vpop.f32.mrb[0].mxu0
    %2385 = vdwg.mxu0
    %2386 = vmatprep.subr.mxu0 0.0
    %v2387 = vand.u32 %v2123, 4294901760
    %2388 = vmatpush1.msra.mxu0 %v2387
    %2389 = vmatprep.subr.mxu0 0.0
    %v2390 = vand.u32 %v2124, 4294901760
    %2391 = vmatpush1.msra.mxu0 %v2390
    %2392 = vmatprep.subr.mxu0 0.0
    %v2393 = vand.u32 %v2125, 4294901760
    %2394 = vmatpush1.msra.mxu0 %v2393
    %2395 = vmatprep.subr.mxu0 0.0
    %v2396 = vand.u32 %v2126, 4294901760
    %2397 = vmatpush1.msra.mxu0 %v2396
    %2398 = vmatprep.subr.mxu0 0.0
    %2399 = vmatpush1.msra.mxu0 0.0
    %2400 = vmatprep.subr.mxu0 0.0
    %2401 = vmatpush1.msra.mxu0 0.0
    %2402 = vmatprep.subr.mxu0 0.0
    %2403 = vmatpush1.msra.mxu0 0.0
    %2404 = vmatprep.subr.mxu0 0.0
    %2405 = vmatpush1.msra.mxu0 0.0
    %2406 = vmatprep.subr.mxu0 0.0
    %2407 = vmatpush1.msra.mxu0 0.0
    %2408 = vmatprep.subr.mxu0 0.0
    %2409 = vmatpush1.msra.mxu0 0.0
    %2410 = vmatprep.subr.mxu0 0.0
    %2411 = vmatpush1.msra.mxu0 0.0
    %2412 = vmatprep.subr.mxu0 0.0
    %2413 = vmatpush1.msra.mxu0 0.0
    %2414 = vmatprep.subr.mxu0 0.0
    %2415 = vmatpush1.msra.mxu0 0.0
    %2416 = vmatprep.subr.mxu0 0.0
    %2417 = vmatpush1.msra.mxu0 0.0
    %2418 = vmatprep.subr.mxu0 0.0
    %2419 = vmatpush1.msra.mxu0 0.0
    %2420 = vmatprep.subr.mxu0 0.0
    %2421 = vmatpush1.msra.mxu0 0.0
    %2422 = vmatprep.subr.mxu0 0.0
    %2423 = vmatpush1.msra.mxu0 0.0
    %2424 = vmatprep.subr.mxu0 0.0
    %2425 = vmatpush1.msra.mxu0 0.0
    %2426 = vmatprep.subr.mxu0 0.0
    %2427 = vmatpush1.msra.mxu0 0.0
    %2428 = vmatprep.subr.mxu0 0.0
    %2429 = vmatpush1.msra.mxu0 0.0
    %2430 = vmatprep.subr.mxu0 0.0
    %2431 = vmatpush1.msra.mxu0 0.0
    %2432 = vmatprep.subr.mxu0 0.0
    %2433 = vmatpush1.msra.mxu0 0.0
    %2434 = vmatprep.subr.mxu0 0.0
    %2435 = vmatpush1.msra.mxu0 0.0
    %2436 = vmatprep.subr.mxu0 0.0
    %2437 = vmatpush1.msra.mxu0 0.0
    %2438 = vmatprep.subr.mxu0 0.0
    %2439 = vmatpush1.msra.mxu0 0.0
    %2440 = vmatprep.subr.mxu0 0.0
    %2441 = vmatpush1.msra.mxu0 0.0
    %2442 = vmatprep.subr.mxu0 0.0
    %2443 = vmatpush1.msra.mxu0 0.0
    %2444 = vmatprep.subr.mxu0 0.0
    %2445 = vmatpush1.msra.mxu0 0.0
    %2446 = vmatprep.subr.mxu0 0.0
    %2447 = vmatpush1.msra.mxu0 0.0
    %2448 = vmatprep.subr.mxu0 0.0
    %2449 = vmatpush1.msra.mxu0 0.0
    %2450 = vmatprep.subr.mxu0 0.0
    %2451 = vmatpush1.msra.mxu0 0.0
    %2452 = vmatprep.subr.mxu0 0.0
    %2453 = vmatpush1.msra.mxu0 0.0
    %2454 = vmatprep.mubr.f32.mxu0 0.0
    %v2455 = vand.u32 %v2134, 4294901760
    %v2456 = vsub.f32 %v2134, %v2455
    %v2457 = vand.u32 %v2456, 4294901760
    %2458 = vmatmul.mubr.f32.gmra.mrb[0].mxu0 %v2457
    %v2459 = vpop.f32.mrb[0].mxu0
    %v2460 = vadd.f32 %v2383, %v2459
    %v2461 = vpop.f32.mrb[0].mxu0
    %2462 = vdwg.mxu0
    %2463 = vmatprep.subr.mxu0 0.0
    %v2464 = vand.u32 %v2123, 4294901760
    %v2465 = vsub.f32 %v2123, %v2464
    %v2466 = vand.u32 %v2465, 4294901760
    %2467 = vmatpush1.msra.mxu0 %v2466
    %2468 = vmatprep.subr.mxu0 0.0
    %v2469 = vand.u32 %v2124, 4294901760
    %v2470 = vsub.f32 %v2124, %v2469
    %v2471 = vand.u32 %v2470, 4294901760
    %2472 = vmatpush1.msra.mxu0 %v2471
    %2473 = vmatprep.subr.mxu0 0.0
    %v2474 = vand.u32 %v2125, 4294901760
    %v2475 = vsub.f32 %v2125, %v2474
    %v2476 = vand.u32 %v2475, 4294901760
    %2477 = vmatpush1.msra.mxu0 %v2476
    %2478 = vmatprep.subr.mxu0 0.0
    %v2479 = vand.u32 %v2126, 4294901760
    %v2480 = vsub.f32 %v2126, %v2479
    %v2481 = vand.u32 %v2480, 4294901760
    %2482 = vmatpush1.msra.mxu0 %v2481
    %2483 = vmatprep.subr.mxu0 0.0
    %2484 = vmatpush1.msra.mxu0 0.0
    %2485 = vmatprep.subr.mxu0 0.0
    %2486 = vmatpush1.msra.mxu0 0.0
    %2487 = vmatprep.subr.mxu0 0.0
    %2488 = vmatpush1.msra.mxu0 0.0
    %2489 = vmatprep.subr.mxu0 0.0
    %2490 = vmatpush1.msra.mxu0 0.0
    %2491 = vmatprep.subr.mxu0 0.0
    %2492 = vmatpush1.msra.mxu0 0.0
    %2493 = vmatprep.subr.mxu0 0.0
    %2494 = vmatpush1.msra.mxu0 0.0
    %2495 = vmatprep.subr.mxu0 0.0
    %2496 = vmatpush1.msra.mxu0 0.0
    %2497 = vmatprep.subr.mxu0 0.0
    %2498 = vmatpush1.msra.mxu0 0.0
    %2499 = vmatprep.subr.mxu0 0.0
    %2500 = vmatpush1.msra.mxu0 0.0
    %2501 = vmatprep.subr.mxu0 0.0
    %2502 = vmatpush1.msra.mxu0 0.0
    %2503 = vmatprep.subr.mxu0 0.0
    %2504 = vmatpush1.msra.mxu0 0.0
    %2505 = vmatprep.subr.mxu0 0.0
    %2506 = vmatpush1.msra.mxu0 0.0
    %2507 = vmatprep.subr.mxu0 0.0
    %2508 = vmatpush1.msra.mxu0 0.0
    %2509 = vmatprep.subr.mxu0 0.0
    %2510 = vmatpush1.msra.mxu0 0.0
    %2511 = vmatprep.subr.mxu0 0.0
    %2512 = vmatpush1.msra.mxu0 0.0
    %2513 = vmatprep.subr.mxu0 0.0
    %2514 = vmatpush1.msra.mxu0 0.0
    %2515 = vmatprep.subr.mxu0 0.0
    %2516 = vmatpush1.msra.mxu0 0.0
    %2517 = vmatprep.subr.mxu0 0.0
    %2518 = vmatpush1.msra.mxu0 0.0
    %2519 = vmatprep.subr.mxu0 0.0
    %2520 = vmatpush1.msra.mxu0 0.0
    %2521 = vmatprep.subr.mxu0 0.0
    %2522 = vmatpush1.msra.mxu0 0.0
    %2523 = vmatprep.subr.mxu0 0.0
    %2524 = vmatpush1.msra.mxu0 0.0
    %2525 = vmatprep.subr.mxu0 0.0
    %2526 = vmatpush1.msra.mxu0 0.0
    %2527 = vmatprep.subr.mxu0 0.0
    %2528 = vmatpush1.msra.mxu0 0.0
    %2529 = vmatprep.subr.mxu0 0.0
    %2530 = vmatpush1.msra.mxu0 0.0
    %2531 = vmatprep.subr.mxu0 0.0
    %2532 = vmatpush1.msra.mxu0 0.0
    %2533 = vmatprep.subr.mxu0 0.0
    %2534 = vmatpush1.msra.mxu0 0.0
    %2535 = vmatprep.subr.mxu0 0.0
    %2536 = vmatpush1.msra.mxu0 0.0
    %2537 = vmatprep.subr.mxu0 0.0
    %2538 = vmatpush1.msra.mxu0 0.0
    %2539 = vmatprep.mubr.f32.mxu0 0.0
    %v2540 = vand.u32 %v2134, 4294901760
    %2541 = vmatmul.mubr.f32.gmra.mrb[0].mxu0 %v2540
    %v2542 = vpop.f32.mrb[0].mxu0
    %v2543 = vadd.f32 %v2460, %v2542
    %v2544 = vpop.f32.mrb[0].mxu0
    %2545 = vdwg.mxu0
    %2546 = vmatprep.subr.mxu0 0.0
    %v2547 = vand.u32 %v2123, 4294901760
    %2548 = vmatpush1.msra.mxu0 %v2547
    %2549 = vmatprep.subr.mxu0 0.0
    %v2550 = vand.u32 %v2124, 4294901760
    %2551 = vmatpush1.msra.mxu0 %v2550
    %2552 = vmatprep.subr.mxu0 0.0
    %v2553 = vand.u32 %v2125, 4294901760
    %2554 = vmatpush1.msra.mxu0 %v2553
    %2555 = vmatprep.subr.mxu0 0.0
    %v2556 = vand.u32 %v2126, 4294901760
    %2557 = vmatpush1.msra.mxu0 %v2556
    %2558 = vmatprep.subr.mxu0 0.0
    %2559 = vmatpush1.msra.mxu0 0.0
    %2560 = vmatprep.subr.mxu0 0.0
    %2561 = vmatpush1.msra.mxu0 0.0
    %2562 = vmatprep.subr.mxu0 0.0
    %2563 = vmatpush1.msra.mxu0 0.0
    %2564 = vmatprep.subr.mxu0 0.0
    %2565 = vmatpush1.msra.mxu0 0.0
    %2566 = vmatprep.subr.mxu0 0.0
    %2567 = vmatpush1.msra.mxu0 0.0
    %2568 = vmatprep.subr.mxu0 0.0
    %2569 = vmatpush1.msra.mxu0 0.0
    %2570 = vmatprep.subr.mxu0 0.0
    %2571 = vmatpush1.msra.mxu0 0.0
    %2572 = vmatprep.subr.mxu0 0.0
    %2573 = vmatpush1.msra.mxu0 0.0
    %2574 = vmatprep.subr.mxu0 0.0
    %2575 = vmatpush1.msra.mxu0 0.0
    %2576 = vmatprep.subr.mxu0 0.0
    %2577 = vmatpush1.msra.mxu0 0.0
    %2578 = vmatprep.subr.mxu0 0.0
    %2579 = vmatpush1.msra.mxu0 0.0
    %2580 = vmatprep.subr.mxu0 0.0
    %2581 = vmatpush1.msra.mxu0 0.0
    %2582 = vmatprep.subr.mxu0 0.0
    %2583 = vmatpush1.msra.mxu0 0.0
    %2584 = vmatprep.subr.mxu0 0.0
    %2585 = vmatpush1.msra.mxu0 0.0
    %2586 = vmatprep.subr.mxu0 0.0
    %2587 = vmatpush1.msra.mxu0 0.0
    %2588 = vmatprep.subr.mxu0 0.0
    %2589 = vmatpush1.msra.mxu0 0.0
    %2590 = vmatprep.subr.mxu0 0.0
    %2591 = vmatpush1.msra.mxu0 0.0
    %2592 = vmatprep.subr.mxu0 0.0
    %2593 = vmatpush1.msra.mxu0 0.0
    %2594 = vmatprep.subr.mxu0 0.0
    %2595 = vmatpush1.msra.mxu0 0.0
    %2596 = vmatprep.subr.mxu0 0.0
    %2597 = vmatpush1.msra.mxu0 0.0
    %2598 = vmatprep.subr.mxu0 0.0
    %2599 = vmatpush1.msra.mxu0 0.0
    %2600 = vmatprep.subr.mxu0 0.0
    %2601 = vmatpush1.msra.mxu0 0.0
    %2602 = vmatprep.subr.mxu0 0.0
    %2603 = vmatpush1.msra.mxu0 0.0
    %2604 = vmatprep.subr.mxu0 0.0
    %2605 = vmatpush1.msra.mxu0 0.0
    %2606 = vmatprep.subr.mxu0 0.0
    %2607 = vmatpush1.msra.mxu0 0.0
    %2608 = vmatprep.subr.mxu0 0.0
    %2609 = vmatpush1.msra.mxu0 0.0
    %2610 = vmatprep.subr.mxu0 0.0
    %2611 = vmatpush1.msra.mxu0 0.0
    %2612 = vmatprep.subr.mxu0 0.0
    %2613 = vmatpush1.msra.mxu0 0.0
    %2614 = vmatprep.mubr.f32.mxu0 0.0
    %v2615 = vand.u32 %v2134, 4294901760
    %2616 = vmatmul.mubr.f32.gmra.mrb[0].mxu0 %v2615
    %v2617 = vpop.f32.mrb[0].mxu0
    %v2618 = vadd.f32 %v2543, %v2617
    %v2619 = vpop.f32.mrb[0].mxu0
    %2620 = vdwg.mxu0
    %2621 = vst [vmem:[#allocation10] sm:$0x3] %v2618
    // Predicated region
    $region46: #{tpu_custom_call.1} parent=1 // pred_check
      _
    $region47: #{tpu_custom_call.1} parent=1 // pred_check_branch
      %2623 = sbr.rel (0) target = $region49
    $region48: #{tpu_custom_call.1} parent=1 // pred_region
      %s2625 = ssub.s32 32, 32
      %2626 = vsyncadd [#allocation4], %s2625
      %s2628 = sshll.u32 [#allocation10], 4
      %s2629 = int_to_ptr.vmem [resolvable:$true] %s2628
      %2631 = dma.vmem_to_hbm [thread:$0]  %s2629, 32, %s7, [#allocation4]
    $region49: #{tpu_custom_call.1} parent=1 // pred_fallthru
      _
    // Predicated region
    $region50: #{tpu_custom_call.1} parent=1 // pred_check
      _
    $region51: #{tpu_custom_call.1} parent=1 // pred_check_branch
      %2633 = sbr.rel (0) target = $region53
    $region52: #{tpu_custom_call.1} parent=1 // pred_region
      %2634 = dma.done [#allocation4], 32
    $region53: #{tpu_custom_call.1} parent=1 // pred_fallthru
      _
    %2635 = vsyncpa [#allocation3], 1
    %2636 = vsyncpa [#allocation6], 1
    %2637 = vsyncpa [#allocation9], 1
    %2638 = vsyncpa [#allocation4], 1

</llo_original>
